<compile_context>
chip_gen: v7x
topology: tpu7x:2x2x1
jax: 0.10.0
libtpu: 0.0.40
codegen_flags: <defaults>
</compile_context>

<pallas_src>
import jax
import jax.numpy as jnp
from jax.experimental import pallas as pl
from jax.experimental.pallas import tpu as pltpu


def textrnn_kernel(x_ref, len_ref, wih_ref, whh_f_ref, whh_b_ref, b_ref,
                   wlin_ref, blin_ref, out_ref, xwf_ref, xwb_ref):
    T, Bp, Ep = x_ref.shape
    Hp = whh_f_ref.shape[0]

    # ---- (1) batched input projection for BOTH directions, biases folded in ----
    x_flat = x_ref[...].reshape(T * Bp, Ep)          # layout-preserving collapse
    xw = jnp.dot(x_flat, wih_ref[...],
                 preferred_element_type=jnp.float32) + b_ref[...]   # (T*Bp, 2Hp)
    xw = xw.reshape(T, Bp, 2 * Hp)
    xwf_ref[...] = xw[:, :, :Hp]                     # aligned lane split into
    xwb_ref[...] = xw[:, :, Hp:]                     # per-direction slabs

    # ---- hoist loop-invariant loads ----
    lens = len_ref[...]                              # (Bp, 1) int32
    whh_f = whh_f_ref[...]                           # (Hp, Hp)
    whh_b = whh_b_ref[...]                           # (Hp, Hp)

    h0 = jnp.zeros((Bp, Hp), jnp.float32)
    p0 = jnp.full((Bp, Hp), -jnp.inf, dtype=jnp.float32)

    # ---- (2) fused fwd/bwd recurrence; only h@Whh + tanh inside the loop ----
    def body(i, carry):
        h_f, h_b, pool_f, pool_b = carry
        tf = i
        tb = T - 1 - i
        xw_f = xwf_ref[tf]                           # (Bp, Hp) = x@Wih_f + b_f
        xw_b = xwb_ref[tb]                           # (Bp, Hp) = x@Wih_b + b_b

        nh_f = jnp.tanh(xw_f + jnp.dot(h_f, whh_f,
                                       preferred_element_type=jnp.float32))
        nh_b = jnp.tanh(xw_b + jnp.dot(h_b, whh_b,
                                       preferred_element_type=jnp.float32))

        out_f = jnp.where(tf < lens, nh_f, 0.0)      # padded positions -> 0
        h_b = jnp.where(tb < lens, nh_b, 0.0)        # bwd h held at 0 until seq starts

        pool_f = jnp.maximum(pool_f, out_f)          # tanh hoisted out of the loop
        pool_b = jnp.maximum(pool_b, h_b)
        return nh_f, h_b, pool_f, pool_b

    _, _, pool_f, pool_b = jax.lax.fori_loop(0, T, body, (h0, h0, p0, p0),
                                             unroll=True)

    # ---- (3) single tanh + fused classifier head + log_softmax ----
    pooled = jnp.tanh(jnp.concatenate([pool_f, pool_b], axis=-1))   # (Bp, 2Hp)
    logits = jnp.dot(pooled, wlin_ref[...],
                     preferred_element_type=jnp.float32) + blin_ref[...]  # (Bp, Cp)
    m = jnp.max(logits, axis=-1, keepdims=True)
    z = logits - m
    lse = jnp.log(jnp.sum(jnp.exp(z), axis=-1, keepdims=True))
    out_ref[...] = z - lse                           # lane-dense (Bp, Cp) store


def _round_up(n, m):
    return ((n + m - 1) // m) * m


@jax.jit
def textrnn_forward(x_bte, lengths, params):
    """x_bte: (B, T, E) float32 (already-embedded tokens), lengths: (B,) int."""
    B, T, E = x_bte.shape
    H = params["whh_f"].shape[0]
    C = params["wlin"].shape[0]

    # pad to vreg tiles: sublane mult of 8 for B, lane mult of 128 for E/H/C
    Bp = _round_up(B, 8)
    Ep = _round_up(E, 128)
    Hp = _round_up(H, 128)
    Cp = _round_up(C, 128)

    # time-major, zero-padded input
    x = jnp.zeros((T, Bp, Ep), jnp.float32)
    x = x.at[:, :B, :E].set(jnp.transpose(x_bte, (1, 0, 2)).astype(jnp.float32))

    lens = jnp.zeros((Bp, 1), jnp.int32).at[:B, 0].set(lengths.astype(jnp.int32))

    # concatenated input-projection weight [Wih_f.T | Wih_b.T], padded: (Ep, 2Hp)
    wih = jnp.zeros((Ep, 2 * Hp), jnp.float32)
    wih = wih.at[:E, :H].set(params["wih_f"].T)
    wih = wih.at[:E, Hp:Hp + H].set(params["wih_b"].T)

    whh_f = jnp.zeros((Hp, Hp), jnp.float32).at[:H, :H].set(params["whh_f"].T)
    whh_b = jnp.zeros((Hp, Hp), jnp.float32).at[:H, :H].set(params["whh_b"].T)

    # combined RNN biases, padded lanes = 0 so padded hidden lanes stay 0
    b = jnp.zeros((1, 2 * Hp), jnp.float32)
    b = b.at[0, :H].set(params["bih_f"] + params["bhh_f"])
    b = b.at[0, Hp:Hp + H].set(params["bih_b"] + params["bhh_b"])

    # classifier: rows [0:H] act on pool_f lanes, rows [Hp:Hp+H] on pool_b lanes
    wlin_t = params["wlin"].T                        # (2H, C)
    wlin = jnp.zeros((2 * Hp, Cp), jnp.float32)
    wlin = wlin.at[:H, :C].set(wlin_t[:H])
    wlin = wlin.at[Hp:Hp + H, :C].set(wlin_t[H:])
    # padded classes get a -1e30 bias so they vanish from log_softmax
    blin = jnp.full((1, Cp), -1e30, jnp.float32).at[0, :C].set(params["blin"])

    vmem = lambda: pl.BlockSpec(memory_space=pltpu.MemorySpace.VMEM)
    args = (x, lens, wih, whh_f, whh_b, b, wlin, blin)
    out = pl.pallas_call(
        textrnn_kernel,
        out_shape=jax.ShapeDtypeStruct((Bp, Cp), jnp.float32),
        in_specs=[vmem() for _ in args],
        out_specs=vmem(),
        scratch_shapes=[pltpu.VMEM((T, Bp, Hp), jnp.float32),
                        pltpu.VMEM((T, Bp, Hp), jnp.float32)],
    )(*args)
    return out[:B, :C]


def textrnn_reference(x, lengths, params):
    """Pure-JAX reference mirroring the PyTorch forward pass."""
    B, T, E = x.shape
    H = params["whh_f"].shape[0]

    def run_dir(wih, whh, bih, bhh, reverse):
        h = jnp.zeros((B, H), jnp.float32)
        outs = {}
        ts = range(T - 1, -1, -1) if reverse else range(T)
        for t in ts:
            new_h = jnp.tanh(x[:, t, :] @ wih.T + bih + h @ whh.T + bhh)
            mask = (t < lengths)[:, None]
            out_t = jnp.where(mask, new_h, 0.0)
            h = out_t if reverse else new_h
            outs[t] = out_t
        return jnp.stack([outs[t] for t in range(T)], axis=1)   # (B, T, H)

    of = run_dir(params["wih_f"], params["whh_f"], params["bih_f"], params["bhh_f"], False)
    ob = run_dir(params["wih_b"], params["whh_b"], params["bih_b"], params["bhh_b"], True)
    r = jnp.concatenate([of, ob], axis=-1)                       # (B, T, 2H), zero-padded
    pooled = jnp.max(jnp.tanh(r), axis=1)                        # max_pool1d over time
    logits = pooled @ params["wlin"].T + params["blin"]
    return jax.nn.log_softmax(logits, axis=-1)


def init_params(key, E, H, C):
    ks = jax.random.split(key, 12)
    s_rnn = 1.0 / jnp.sqrt(H)
    s_lin = 1.0 / jnp.sqrt(2 * H)
    u = lambda k, shape, s: jax.random.uniform(k, shape, jnp.float32, -s, s)
    return {
        "wih_f": u(ks[0], (H, E), s_rnn), "whh_f": u(ks[1], (H, H), s_rnn),
        "bih_f": u(ks[2], (H,), s_rnn),   "bhh_f": u(ks[3], (H,), s_rnn),
        "wih_b": u(ks[4], (H, E), s_rnn), "whh_b": u(ks[5], (H, H), s_rnn),
        "bih_b": u(ks[6], (H,), s_rnn),   "bhh_b": u(ks[7], (H,), s_rnn),
        "wlin":  u(ks[8], (C, 2 * H), s_lin), "blin": u(ks[9], (C,), s_lin),
    }


if __name__ == "__main__":
    B, T, E, H, C = 2, 8, 32, 32, 4
    key = jax.random.PRNGKey(0)
    k_x, k_p = jax.random.split(key)

    # x is the already-embedded input (the module has no embedding layer);
    # lengths sorted descending as required by pack_padded_sequence, max == T.
    x = jax.random.normal(k_x, (B, T, E), jnp.float32)
    lengths = jnp.array([8, 5], dtype=jnp.int32)
    params = init_params(k_p, E, H, C)

    # TODO(synk): nn.Dropout is instantiated but never applied in forward(); nothing to implement.

    out = textrnn_forward(x, lengths, params)
    out = jax.block_until_ready(out)

    ref = textrnn_reference(x, lengths, params)
    assert out.shape == (B, C)
    assert jnp.allclose(out, ref, atol=1e-4, rtol=1e-4), (out, ref)

    print("KERNEL_OK")
</pallas_src>

<mosaic_0001>
module attributes {stable_mosaic.version = 11 : i64} {
  func.func @textrnn_kernel(%arg0: memref<8x8x128xf32, #tpu.memory_space<vmem>>, %arg1: memref<8x1xi32, #tpu.memory_space<vmem>>, %arg2: memref<128x256xf32, #tpu.memory_space<vmem>>, %arg3: memref<128x128xf32, #tpu.memory_space<vmem>>, %arg4: memref<128x128xf32, #tpu.memory_space<vmem>>, %arg5: memref<1x256xf32, #tpu.memory_space<vmem>>, %arg6: memref<256x128xf32, #tpu.memory_space<vmem>>, %arg7: memref<1x128xf32, #tpu.memory_space<vmem>>, %arg8: memref<8x128xf32, #tpu.memory_space<vmem>>, %arg9: memref<8x8x128xf32, #tpu.memory_space<vmem>>, %arg10: memref<8x8x128xf32, #tpu.memory_space<vmem>>) attributes {dimension_semantics = [], scalar_prefetch = 0 : i64, scratch_operands = 2 : i64, tpu.core_type = #tpu.core_type<tc>} {
    %c0 = arith.constant 0 : index
    %c0_0 = arith.constant 0 : index
    %c0_1 = arith.constant 0 : index
    %0 = vector.load %arg0[%c0, %c0_0, %c0_1] : memref<8x8x128xf32, #tpu.memory_space<vmem>>, vector<8x8x128xf32>
    %1 = vector.shape_cast %0 : vector<8x8x128xf32> to vector<64x128xf32>
    %c0_2 = arith.constant 0 : index
    %c0_3 = arith.constant 0 : index
    %2 = vector.load %arg2[%c0_2, %c0_3] : memref<128x256xf32, #tpu.memory_space<vmem>>, vector<128x256xf32>
    %cst = arith.constant dense<0.000000e+00> : vector<64x256xf32>
    %3 = tpu.matmul %1, %2, %cst {dimension_numbers = #tpu.dot_dimension_numbers<[1], [0], [0], [1], [0, 0, 1, 1], [], []>} : vector<64x128xf32>, vector<128x256xf32>, vector<64x256xf32> -> vector<64x256xf32>
    %c0_4 = arith.constant 0 : index
    %c0_5 = arith.constant 0 : index
    %4 = vector.load %arg5[%c0_4, %c0_5] : memref<1x256xf32, #tpu.memory_space<vmem>>, vector<1x256xf32>
    %5 = vector.broadcast %4 : vector<1x256xf32> to vector<64x256xf32>
    %6 = arith.addf %3, %5 : vector<64x256xf32>
    %7 = vector.shape_cast %6 : vector<64x256xf32> to vector<8x8x256xf32>
    %8 = vector.extract_strided_slice %7 {offsets = [0, 0, 0], sizes = [8, 8, 128], strides = [1, 1, 1]} : vector<8x8x256xf32> to vector<8x8x128xf32>
    %c0_6 = arith.constant 0 : index
    %c0_7 = arith.constant 0 : index
    %c0_8 = arith.constant 0 : index
    %9 = vector.load %arg9[%c0_6, %c0_7, %c0_8] : memref<8x8x128xf32, #tpu.memory_space<vmem>>, vector<8x8x128xf32>
    tpu.vector_store %arg9[%c0_6, %c0_7, %c0_8], %8 {strides = array<i32>} : memref<8x8x128xf32, #tpu.memory_space<vmem>>, vector<8x8x128xf32>,
    %10 = vector.extract_strided_slice %7 {offsets = [0, 0, 128], sizes = [8, 8, 128], strides = [1, 1, 1]} : vector<8x8x256xf32> to vector<8x8x128xf32>
    %c0_9 = arith.constant 0 : index
    %c0_10 = arith.constant 0 : index
    %c0_11 = arith.constant 0 : index
    %11 = vector.load %arg10[%c0_9, %c0_10, %c0_11] : memref<8x8x128xf32, #tpu.memory_space<vmem>>, vector<8x8x128xf32>
    tpu.vector_store %arg10[%c0_9, %c0_10, %c0_11], %10 {strides = array<i32>} : memref<8x8x128xf32, #tpu.memory_space<vmem>>, vector<8x8x128xf32>,
    %c0_12 = arith.constant 0 : index
    %c0_13 = arith.constant 0 : index
    %12 = vector.load %arg1[%c0_12, %c0_13] : memref<8x1xi32, #tpu.memory_space<vmem>>, vector<8x1xi32>
    %c0_14 = arith.constant 0 : index
    %c0_15 = arith.constant 0 : index
    %13 = vector.load %arg3[%c0_14, %c0_15] : memref<128x128xf32, #tpu.memory_space<vmem>>, vector<128x128xf32>
    %c0_16 = arith.constant 0 : index
    %c0_17 = arith.constant 0 : index
    %14 = vector.load %arg4[%c0_16, %c0_17] : memref<128x128xf32, #tpu.memory_space<vmem>>, vector<128x128xf32>
    %cst_18 = arith.constant 0.000000e+00 : f32
    %15 = vector.broadcast %cst_18 : f32 to vector<8x128xf32>
    %cst_19 = arith.constant 0xFF800000 : f32
    %16 = vector.broadcast %cst_19 : f32 to vector<8x128xf32>
    %c0_i32 = arith.constant 0 : i32
    %c7_i32 = arith.constant 7 : i32
    %17 = arith.subi %c7_i32, %c0_i32 : i32
    %18 = arith.index_cast %c0_i32 : i32 to index
    %c0_20 = arith.constant 0 : index
    %c0_21 = arith.constant 0 : index
    %19 = vector.load %arg9[%18, %c0_20, %c0_21] : memref<8x8x128xf32, #tpu.memory_space<vmem>>, vector<1x8x128xf32>
    %20 = vector.shape_cast %19 : vector<1x8x128xf32> to vector<8x128xf32>
    %21 = arith.index_cast %17 : i32 to index
    %c0_22 = arith.constant 0 : index
    %c0_23 = arith.constant 0 : index
    %22 = vector.load %arg10[%21, %c0_22, %c0_23] : memref<8x8x128xf32, #tpu.memory_space<vmem>>, vector<1x8x128xf32>
    %23 = vector.shape_cast %22 : vector<1x8x128xf32> to vector<8x128xf32>
    %cst_24 = arith.constant dense<0.000000e+00> : vector<8x128xf32>
    %24 = tpu.matmul %15, %13, %cst_24 {dimension_numbers = #tpu.dot_dimension_numbers<[1], [0], [0], [1], [0, 0, 1, 1], [], []>} : vector<8x128xf32>, vector<128x128xf32>, vector<8x128xf32> -> vector<8x128xf32>
    %25 = arith.addf %20, %24 : vector<8x128xf32>
    %26 = math.tanh %25 : vector<8x128xf32>
    %cst_25 = arith.constant dense<0.000000e+00> : vector<8x128xf32>
    %27 = tpu.matmul %15, %14, %cst_25 {dimension_numbers = #tpu.dot_dimension_numbers<[1], [0], [0], [1], [0, 0, 1, 1], [], []>} : vector<8x128xf32>, vector<128x128xf32>, vector<8x128xf32> -> vector<8x128xf32>
    %28 = arith.addf %23, %27 : vector<8x128xf32>
    %29 = math.tanh %28 : vector<8x128xf32>
    %30 = vector.broadcast %c0_i32 : i32 to vector<8x1xi32>
    %31 = arith.cmpi slt, %30, %12 : vector<8x1xi32>
    %cst_26 = arith.constant 0.000000e+00 : f32
    %32 = vector.shape_cast %31 : vector<8x1xi1> to vector<8x1xi1>
    %33 = vector.broadcast %32 : vector<8x1xi1> to vector<8x128xi1>
    %34 = vector.broadcast %cst_26 : f32 to vector<8x128xf32>
    %35 = arith.select %33, %26, %34 : vector<8x128xi1>, vector<8x128xf32>
    %36 = vector.broadcast %17 : i32 to vector<8x1xi32>
    %37 = arith.cmpi slt, %36, %12 : vector<8x1xi32>
    %cst_27 = arith.constant 0.000000e+00 : f32
    %38 = vector.shape_cast %37 : vector<8x1xi1> to vector<8x1xi1>
    %39 = vector.broadcast %38 : vector<8x1xi1> to vector<8x128xi1>
    %40 = vector.broadcast %cst_27 : f32 to vector<8x128xf32>
    %41 = arith.select %39, %29, %40 : vector<8x128xi1>, vector<8x128xf32>
    %42 = arith.maximumf %16, %35 : vector<8x128xf32>
    %43 = arith.maximumf %16, %41 : vector<8x128xf32>
    %c1_i32 = arith.constant 1 : i32
    %c7_i32_28 = arith.constant 7 : i32
    %44 = arith.subi %c7_i32_28, %c1_i32 : i32
    %45 = arith.index_cast %c1_i32 : i32 to index
    %c0_29 = arith.constant 0 : index
    %c0_30 = arith.constant 0 : index
    %46 = vector.load %arg9[%45, %c0_29, %c0_30] : memref<8x8x128xf32, #tpu.memory_space<vmem>>, vector<1x8x128xf32>
    %47 = vector.shape_cast %46 : vector<1x8x128xf32> to vector<8x128xf32>
    %48 = arith.index_cast %44 : i32 to index
    %c0_31 = arith.constant 0 : index
    %c0_32 = arith.constant 0 : index
    %49 = vector.load %arg10[%48, %c0_31, %c0_32] : memref<8x8x128xf32, #tpu.memory_space<vmem>>, vector<1x8x128xf32>
    %50 = vector.shape_cast %49 : vector<1x8x128xf32> to vector<8x128xf32>
    %cst_33 = arith.constant dense<0.000000e+00> : vector<8x128xf32>
    %51 = tpu.matmul %26, %13, %cst_33 {dimension_numbers = #tpu.dot_dimension_numbers<[1], [0], [0], [1], [0, 0, 1, 1], [], []>} : vector<8x128xf32>, vector<128x128xf32>, vector<8x128xf32> -> vector<8x128xf32>
    %52 = arith.addf %47, %51 : vector<8x128xf32>
    %53 = math.tanh %52 : vector<8x128xf32>
    %cst_34 = arith.constant dense<0.000000e+00> : vector<8x128xf32>
    %54 = tpu.matmul %41, %14, %cst_34 {dimension_numbers = #tpu.dot_dimension_numbers<[1], [0], [0], [1], [0, 0, 1, 1], [], []>} : vector<8x128xf32>, vector<128x128xf32>, vector<8x128xf32> -> vector<8x128xf32>
    %55 = arith.addf %50, %54 : vector<8x128xf32>
    %56 = math.tanh %55 : vector<8x128xf32>
    %57 = vector.broadcast %c1_i32 : i32 to vector<8x1xi32>
    %58 = arith.cmpi slt, %57, %12 : vector<8x1xi32>
    %cst_35 = arith.constant 0.000000e+00 : f32
    %59 = vector.shape_cast %58 : vector<8x1xi1> to vector<8x1xi1>
    %60 = vector.broadcast %59 : vector<8x1xi1> to vector<8x128xi1>
    %61 = vector.broadcast %cst_35 : f32 to vector<8x128xf32>
    %62 = arith.select %60, %53, %61 : vector<8x128xi1>, vector<8x128xf32>
    %63 = vector.broadcast %44 : i32 to vector<8x1xi32>
    %64 = arith.cmpi slt, %63, %12 : vector<8x1xi32>
    %cst_36 = arith.constant 0.000000e+00 : f32
    %65 = vector.shape_cast %64 : vector<8x1xi1> to vector<8x1xi1>
    %66 = vector.broadcast %65 : vector<8x1xi1> to vector<8x128xi1>
    %67 = vector.broadcast %cst_36 : f32 to vector<8x128xf32>
    %68 = arith.select %66, %56, %67 : vector<8x128xi1>, vector<8x128xf32>
    %69 = arith.maximumf %42, %62 : vector<8x128xf32>
    %70 = arith.maximumf %43, %68 : vector<8x128xf32>
    %c2_i32 = arith.constant 2 : i32
    %c7_i32_37 = arith.constant 7 : i32
    %71 = arith.subi %c7_i32_37, %c2_i32 : i32
    %72 = arith.index_cast %c2_i32 : i32 to index
    %c0_38 = arith.constant 0 : index
    %c0_39 = arith.constant 0 : index
    %73 = vector.load %arg9[%72, %c0_38, %c0_39] : memref<8x8x128xf32, #tpu.memory_space<vmem>>, vector<1x8x128xf32>
    %74 = vector.shape_cast %73 : vector<1x8x128xf32> to vector<8x128xf32>
    %75 = arith.index_cast %71 : i32 to index
    %c0_40 = arith.constant 0 : index
    %c0_41 = arith.constant 0 : index
    %76 = vector.load %arg10[%75, %c0_40, %c0_41] : memref<8x8x128xf32, #tpu.memory_space<vmem>>, vector<1x8x128xf32>
    %77 = vector.shape_cast %76 : vector<1x8x128xf32> to vector<8x128xf32>
    %cst_42 = arith.constant dense<0.000000e+00> : vector<8x128xf32>
    %78 = tpu.matmul %53, %13, %cst_42 {dimension_numbers = #tpu.dot_dimension_numbers<[1], [0], [0], [1], [0, 0, 1, 1], [], []>} : vector<8x128xf32>, vector<128x128xf32>, vector<8x128xf32> -> vector<8x128xf32>
    %79 = arith.addf %74, %78 : vector<8x128xf32>
    %80 = math.tanh %79 : vector<8x128xf32>
    %cst_43 = arith.constant dense<0.000000e+00> : vector<8x128xf32>
    %81 = tpu.matmul %68, %14, %cst_43 {dimension_numbers = #tpu.dot_dimension_numbers<[1], [0], [0], [1], [0, 0, 1, 1], [], []>} : vector<8x128xf32>, vector<128x128xf32>, vector<8x128xf32> -> vector<8x128xf32>
    %82 = arith.addf %77, %81 : vector<8x128xf32>
    %83 = math.tanh %82 : vector<8x128xf32>
    %84 = vector.broadcast %c2_i32 : i32 to vector<8x1xi32>
    %85 = arith.cmpi slt, %84, %12 : vector<8x1xi32>
    %cst_44 = arith.constant 0.000000e+00 : f32
    %86 = vector.shape_cast %85 : vector<8x1xi1> to vector<8x1xi1>
    %87 = vector.broadcast %86 : vector<8x1xi1> to vector<8x128xi1>
    %88 = vector.broadcast %cst_44 : f32 to vector<8x128xf32>
    %89 = arith.select %87, %80, %88 : vector<8x128xi1>, vector<8x128xf32>
    %90 = vector.broadcast %71 : i32 to vector<8x1xi32>
    %91 = arith.cmpi slt, %90, %12 : vector<8x1xi32>
    %cst_45 = arith.constant 0.000000e+00 : f32
    %92 = vector.shape_cast %91 : vector<8x1xi1> to vector<8x1xi1>
    %93 = vector.broadcast %92 : vector<8x1xi1> to vector<8x128xi1>
    %94 = vector.broadcast %cst_45 : f32 to vector<8x128xf32>
    %95 = arith.select %93, %83, %94 : vector<8x128xi1>, vector<8x128xf32>
    %96 = arith.maximumf %69, %89 : vector<8x128xf32>
    %97 = arith.maximumf %70, %95 : vector<8x128xf32>
    %c3_i32 = arith.constant 3 : i32
    %c7_i32_46 = arith.constant 7 : i32
    %98 = arith.subi %c7_i32_46, %c3_i32 : i32
    %99 = arith.index_cast %c3_i32 : i32 to index
    %c0_47 = arith.constant 0 : index
    %c0_48 = arith.constant 0 : index
    %100 = vector.load %arg9[%99, %c0_47, %c0_48] : memref<8x8x128xf32, #tpu.memory_space<vmem>>, vector<1x8x128xf32>
    %101 = vector.shape_cast %100 : vector<1x8x128xf32> to vector<8x128xf32>
    %102 = arith.index_cast %98 : i32 to index
    %c0_49 = arith.constant 0 : index
    %c0_50 = arith.constant 0 : index
    %103 = vector.load %arg10[%102, %c0_49, %c0_50] : memref<8x8x128xf32, #tpu.memory_space<vmem>>, vector<1x8x128xf32>
    %104 = vector.shape_cast %103 : vector<1x8x128xf32> to vector<8x128xf32>
    %cst_51 = arith.constant dense<0.000000e+00> : vector<8x128xf32>
    %105 = tpu.matmul %80, %13, %cst_51 {dimension_numbers = #tpu.dot_dimension_numbers<[1], [0], [0], [1], [0, 0, 1, 1], [], []>} : vector<8x128xf32>, vector<128x128xf32>, vector<8x128xf32> -> vector<8x128xf32>
    %106 = arith.addf %101, %105 : vector<8x128xf32>
    %107 = math.tanh %106 : vector<8x128xf32>
    %cst_52 = arith.constant dense<0.000000e+00> : vector<8x128xf32>
    %108 = tpu.matmul %95, %14, %cst_52 {dimension_numbers = #tpu.dot_dimension_numbers<[1], [0], [0], [1], [0, 0, 1, 1], [], []>} : vector<8x128xf32>, vector<128x128xf32>, vector<8x128xf32> -> vector<8x128xf32>
    %109 = arith.addf %104, %108 : vector<8x128xf32>
    %110 = math.tanh %109 : vector<8x128xf32>
    %111 = vector.broadcast %c3_i32 : i32 to vector<8x1xi32>
    %112 = arith.cmpi slt, %111, %12 : vector<8x1xi32>
    %cst_53 = arith.constant 0.000000e+00 : f32
    %113 = vector.shape_cast %112 : vector<8x1xi1> to vector<8x1xi1>
    %114 = vector.broadcast %113 : vector<8x1xi1> to vector<8x128xi1>
    %115 = vector.broadcast %cst_53 : f32 to vector<8x128xf32>
    %116 = arith.select %114, %107, %115 : vector<8x128xi1>, vector<8x128xf32>
    %117 = vector.broadcast %98 : i32 to vector<8x1xi32>
    %118 = arith.cmpi slt, %117, %12 : vector<8x1xi32>
    %cst_54 = arith.constant 0.000000e+00 : f32
    %119 = vector.shape_cast %118 : vector<8x1xi1> to vector<8x1xi1>
    %120 = vector.broadcast %119 : vector<8x1xi1> to vector<8x128xi1>
    %121 = vector.broadcast %cst_54 : f32 to vector<8x128xf32>
    %122 = arith.select %120, %110, %121 : vector<8x128xi1>, vector<8x128xf32>
    %123 = arith.maximumf %96, %116 : vector<8x128xf32>
    %124 = arith.maximumf %97, %122 : vector<8x128xf32>
    %c4_i32 = arith.constant 4 : i32
    %c7_i32_55 = arith.constant 7 : i32
    %125 = arith.subi %c7_i32_55, %c4_i32 : i32
    %126 = arith.index_cast %c4_i32 : i32 to index
    %c0_56 = arith.constant 0 : index
    %c0_57 = arith.constant 0 : index
    %127 = vector.load %arg9[%126, %c0_56, %c0_57] : memref<8x8x128xf32, #tpu.memory_space<vmem>>, vector<1x8x128xf32>
    %128 = vector.shape_cast %127 : vector<1x8x128xf32> to vector<8x128xf32>
    %129 = arith.index_cast %125 : i32 to index
    %c0_58 = arith.constant 0 : index
    %c0_59 = arith.constant 0 : index
    %130 = vector.load %arg10[%129, %c0_58, %c0_59] : memref<8x8x128xf32, #tpu.memory_space<vmem>>, vector<1x8x128xf32>
    %131 = vector.shape_cast %130 : vector<1x8x128xf32> to vector<8x128xf32>
    %cst_60 = arith.constant dense<0.000000e+00> : vector<8x128xf32>
    %132 = tpu.matmul %107, %13, %cst_60 {dimension_numbers = #tpu.dot_dimension_numbers<[1], [0], [0], [1], [0, 0, 1, 1], [], []>} : vector<8x128xf32>, vector<128x128xf32>, vector<8x128xf32> -> vector<8x128xf32>
    %133 = arith.addf %128, %132 : vector<8x128xf32>
    %134 = math.tanh %133 : vector<8x128xf32>
    %cst_61 = arith.constant dense<0.000000e+00> : vector<8x128xf32>
    %135 = tpu.matmul %122, %14, %cst_61 {dimension_numbers = #tpu.dot_dimension_numbers<[1], [0], [0], [1], [0, 0, 1, 1], [], []>} : vector<8x128xf32>, vector<128x128xf32>, vector<8x128xf32> -> vector<8x128xf32>
    %136 = arith.addf %131, %135 : vector<8x128xf32>
    %137 = math.tanh %136 : vector<8x128xf32>
    %138 = vector.broadcast %c4_i32 : i32 to vector<8x1xi32>
    %139 = arith.cmpi slt, %138, %12 : vector<8x1xi32>
    %cst_62 = arith.constant 0.000000e+00 : f32
    %140 = vector.shape_cast %139 : vector<8x1xi1> to vector<8x1xi1>
    %141 = vector.broadcast %140 : vector<8x1xi1> to vector<8x128xi1>
    %142 = vector.broadcast %cst_62 : f32 to vector<8x128xf32>
    %143 = arith.select %141, %134, %142 : vector<8x128xi1>, vector<8x128xf32>
    %144 = vector.broadcast %125 : i32 to vector<8x1xi32>
    %145 = arith.cmpi slt, %144, %12 : vector<8x1xi32>
    %cst_63 = arith.constant 0.000000e+00 : f32
    %146 = vector.shape_cast %145 : vector<8x1xi1> to vector<8x1xi1>
    %147 = vector.broadcast %146 : vector<8x1xi1> to vector<8x128xi1>
    %148 = vector.broadcast %cst_63 : f32 to vector<8x128xf32>
    %149 = arith.select %147, %137, %148 : vector<8x128xi1>, vector<8x128xf32>
    %150 = arith.maximumf %123, %143 : vector<8x128xf32>
    %151 = arith.maximumf %124, %149 : vector<8x128xf32>
    %c5_i32 = arith.constant 5 : i32
    %c7_i32_64 = arith.constant 7 : i32
    %152 = arith.subi %c7_i32_64, %c5_i32 : i32
    %153 = arith.index_cast %c5_i32 : i32 to index
    %c0_65 = arith.constant 0 : index
    %c0_66 = arith.constant 0 : index
    %154 = vector.load %arg9[%153, %c0_65, %c0_66] : memref<8x8x128xf32, #tpu.memory_space<vmem>>, vector<1x8x128xf32>
    %155 = vector.shape_cast %154 : vector<1x8x128xf32> to vector<8x128xf32>
    %156 = arith.index_cast %152 : i32 to index
    %c0_67 = arith.constant 0 : index
    %c0_68 = arith.constant 0 : index
    %157 = vector.load %arg10[%156, %c0_67, %c0_68] : memref<8x8x128xf32, #tpu.memory_space<vmem>>, vector<1x8x128xf32>
    %158 = vector.shape_cast %157 : vector<1x8x128xf32> to vector<8x128xf32>
    %cst_69 = arith.constant dense<0.000000e+00> : vector<8x128xf32>
    %159 = tpu.matmul %134, %13, %cst_69 {dimension_numbers = #tpu.dot_dimension_numbers<[1], [0], [0], [1], [0, 0, 1, 1], [], []>} : vector<8x128xf32>, vector<128x128xf32>, vector<8x128xf32> -> vector<8x128xf32>
    %160 = arith.addf %155, %159 : vector<8x128xf32>
    %161 = math.tanh %160 : vector<8x128xf32>
    %cst_70 = arith.constant dense<0.000000e+00> : vector<8x128xf32>
    %162 = tpu.matmul %149, %14, %cst_70 {dimension_numbers = #tpu.dot_dimension_numbers<[1], [0], [0], [1], [0, 0, 1, 1], [], []>} : vector<8x128xf32>, vector<128x128xf32>, vector<8x128xf32> -> vector<8x128xf32>
    %163 = arith.addf %158, %162 : vector<8x128xf32>
    %164 = math.tanh %163 : vector<8x128xf32>
    %165 = vector.broadcast %c5_i32 : i32 to vector<8x1xi32>
    %166 = arith.cmpi slt, %165, %12 : vector<8x1xi32>
    %cst_71 = arith.constant 0.000000e+00 : f32
    %167 = vector.shape_cast %166 : vector<8x1xi1> to vector<8x1xi1>
    %168 = vector.broadcast %167 : vector<8x1xi1> to vector<8x128xi1>
    %169 = vector.broadcast %cst_71 : f32 to vector<8x128xf32>
    %170 = arith.select %168, %161, %169 : vector<8x128xi1>, vector<8x128xf32>
    %171 = vector.broadcast %152 : i32 to vector<8x1xi32>
    %172 = arith.cmpi slt, %171, %12 : vector<8x1xi32>
    %cst_72 = arith.constant 0.000000e+00 : f32
    %173 = vector.shape_cast %172 : vector<8x1xi1> to vector<8x1xi1>
    %174 = vector.broadcast %173 : vector<8x1xi1> to vector<8x128xi1>
    %175 = vector.broadcast %cst_72 : f32 to vector<8x128xf32>
    %176 = arith.select %174, %164, %175 : vector<8x128xi1>, vector<8x128xf32>
    %177 = arith.maximumf %150, %170 : vector<8x128xf32>
    %178 = arith.maximumf %151, %176 : vector<8x128xf32>
    %c6_i32 = arith.constant 6 : i32
    %c7_i32_73 = arith.constant 7 : i32
    %179 = arith.subi %c7_i32_73, %c6_i32 : i32
    %180 = arith.index_cast %c6_i32 : i32 to index
    %c0_74 = arith.constant 0 : index
    %c0_75 = arith.constant 0 : index
    %181 = vector.load %arg9[%180, %c0_74, %c0_75] : memref<8x8x128xf32, #tpu.memory_space<vmem>>, vector<1x8x128xf32>
    %182 = vector.shape_cast %181 : vector<1x8x128xf32> to vector<8x128xf32>
    %183 = arith.index_cast %179 : i32 to index
    %c0_76 = arith.constant 0 : index
    %c0_77 = arith.constant 0 : index
    %184 = vector.load %arg10[%183, %c0_76, %c0_77] : memref<8x8x128xf32, #tpu.memory_space<vmem>>, vector<1x8x128xf32>
    %185 = vector.shape_cast %184 : vector<1x8x128xf32> to vector<8x128xf32>
    %cst_78 = arith.constant dense<0.000000e+00> : vector<8x128xf32>
    %186 = tpu.matmul %161, %13, %cst_78 {dimension_numbers = #tpu.dot_dimension_numbers<[1], [0], [0], [1], [0, 0, 1, 1], [], []>} : vector<8x128xf32>, vector<128x128xf32>, vector<8x128xf32> -> vector<8x128xf32>
    %187 = arith.addf %182, %186 : vector<8x128xf32>
    %188 = math.tanh %187 : vector<8x128xf32>
    %cst_79 = arith.constant dense<0.000000e+00> : vector<8x128xf32>
    %189 = tpu.matmul %176, %14, %cst_79 {dimension_numbers = #tpu.dot_dimension_numbers<[1], [0], [0], [1], [0, 0, 1, 1], [], []>} : vector<8x128xf32>, vector<128x128xf32>, vector<8x128xf32> -> vector<8x128xf32>
    %190 = arith.addf %185, %189 : vector<8x128xf32>
    %191 = math.tanh %190 : vector<8x128xf32>
    %192 = vector.broadcast %c6_i32 : i32 to vector<8x1xi32>
    %193 = arith.cmpi slt, %192, %12 : vector<8x1xi32>
    %cst_80 = arith.constant 0.000000e+00 : f32
    %194 = vector.shape_cast %193 : vector<8x1xi1> to vector<8x1xi1>
    %195 = vector.broadcast %194 : vector<8x1xi1> to vector<8x128xi1>
    %196 = vector.broadcast %cst_80 : f32 to vector<8x128xf32>
    %197 = arith.select %195, %188, %196 : vector<8x128xi1>, vector<8x128xf32>
    %198 = vector.broadcast %179 : i32 to vector<8x1xi32>
    %199 = arith.cmpi slt, %198, %12 : vector<8x1xi32>
    %cst_81 = arith.constant 0.000000e+00 : f32
    %200 = vector.shape_cast %199 : vector<8x1xi1> to vector<8x1xi1>
    %201 = vector.broadcast %200 : vector<8x1xi1> to vector<8x128xi1>
    %202 = vector.broadcast %cst_81 : f32 to vector<8x128xf32>
    %203 = arith.select %201, %191, %202 : vector<8x128xi1>, vector<8x128xf32>
    %204 = arith.maximumf %177, %197 : vector<8x128xf32>
    %205 = arith.maximumf %178, %203 : vector<8x128xf32>
    %c7_i32_82 = arith.constant 7 : i32
    %c7_i32_83 = arith.constant 7 : i32
    %206 = arith.subi %c7_i32_83, %c7_i32_82 : i32
    %207 = arith.index_cast %c7_i32_82 : i32 to index
    %c0_84 = arith.constant 0 : index
    %c0_85 = arith.constant 0 : index
    %208 = vector.load %arg9[%207, %c0_84, %c0_85] : memref<8x8x128xf32, #tpu.memory_space<vmem>>, vector<1x8x128xf32>
    %209 = vector.shape_cast %208 : vector<1x8x128xf32> to vector<8x128xf32>
    %210 = arith.index_cast %206 : i32 to index
    %c0_86 = arith.constant 0 : index
    %c0_87 = arith.constant 0 : index
    %211 = vector.load %arg10[%210, %c0_86, %c0_87] : memref<8x8x128xf32, #tpu.memory_space<vmem>>, vector<1x8x128xf32>
    %212 = vector.shape_cast %211 : vector<1x8x128xf32> to vector<8x128xf32>
    %cst_88 = arith.constant dense<0.000000e+00> : vector<8x128xf32>
    %213 = tpu.matmul %188, %13, %cst_88 {dimension_numbers = #tpu.dot_dimension_numbers<[1], [0], [0], [1], [0, 0, 1, 1], [], []>} : vector<8x128xf32>, vector<128x128xf32>, vector<8x128xf32> -> vector<8x128xf32>
    %214 = arith.addf %209, %213 : vector<8x128xf32>
    %215 = math.tanh %214 : vector<8x128xf32>
    %cst_89 = arith.constant dense<0.000000e+00> : vector<8x128xf32>
    %216 = tpu.matmul %203, %14, %cst_89 {dimension_numbers = #tpu.dot_dimension_numbers<[1], [0], [0], [1], [0, 0, 1, 1], [], []>} : vector<8x128xf32>, vector<128x128xf32>, vector<8x128xf32> -> vector<8x128xf32>
    %217 = arith.addf %212, %216 : vector<8x128xf32>
    %218 = math.tanh %217 : vector<8x128xf32>
    %219 = vector.broadcast %c7_i32_82 : i32 to vector<8x1xi32>
    %220 = arith.cmpi slt, %219, %12 : vector<8x1xi32>
    %cst_90 = arith.constant 0.000000e+00 : f32
    %221 = vector.shape_cast %220 : vector<8x1xi1> to vector<8x1xi1>
    %222 = vector.broadcast %221 : vector<8x1xi1> to vector<8x128xi1>
    %223 = vector.broadcast %cst_90 : f32 to vector<8x128xf32>
    %224 = arith.select %222, %215, %223 : vector<8x128xi1>, vector<8x128xf32>
    %225 = vector.broadcast %206 : i32 to vector<8x1xi32>
    %226 = arith.cmpi slt, %225, %12 : vector<8x1xi32>
    %cst_91 = arith.constant 0.000000e+00 : f32
    %227 = vector.shape_cast %226 : vector<8x1xi1> to vector<8x1xi1>
    %228 = vector.broadcast %227 : vector<8x1xi1> to vector<8x128xi1>
    %229 = vector.broadcast %cst_91 : f32 to vector<8x128xf32>
    %230 = arith.select %228, %218, %229 : vector<8x128xi1>, vector<8x128xf32>
    %231 = arith.maximumf %204, %224 : vector<8x128xf32>
    %232 = arith.maximumf %205, %230 : vector<8x128xf32>
    %c8_i32 = arith.constant 8 : i32
    %233 = tpu.concatenate %231, %232 in 1 : vector<8x128xf32>, vector<8x128xf32> -> vector<8x256xf32>
    %234 = math.tanh %233 : vector<8x256xf32>
    %c0_92 = arith.constant 0 : index
    %c0_93 = arith.constant 0 : index
    %235 = vector.load %arg6[%c0_92, %c0_93] : memref<256x128xf32, #tpu.memory_space<vmem>>, vector<256x128xf32>
    %cst_94 = arith.constant dense<0.000000e+00> : vector<8x128xf32>
    %236 = tpu.matmul %234, %235, %cst_94 {dimension_numbers = #tpu.dot_dimension_numbers<[1], [0], [0], [1], [0, 0, 1, 1], [], []>} : vector<8x256xf32>, vector<256x128xf32>, vector<8x128xf32> -> vector<8x128xf32>
    %c0_95 = arith.constant 0 : index
    %c0_96 = arith.constant 0 : index
    %237 = vector.load %arg7[%c0_95, %c0_96] : memref<1x128xf32, #tpu.memory_space<vmem>>, vector<1x128xf32>
    %238 = vector.broadcast %237 : vector<1x128xf32> to vector<8x128xf32>
    %239 = arith.addf %236, %238 : vector<8x128xf32>
    %cst_97 = arith.constant dense<0xFF800000> : vector<8xf32>
    %240 = vector.multi_reduction <maximumf>, %239, %cst_97 [1] : vector<8x128xf32> to vector<8xf32>
    %241 = vector.shape_cast %240 : vector<8xf32> to vector<8x1xf32>
    %242 = vector.broadcast %241 : vector<8x1xf32> to vector<8x128xf32>
    %243 = arith.subf %239, %242 : vector<8x128xf32>
    %244 = math.exp %243 : vector<8x128xf32>
    %cst_98 = arith.constant dense<0.000000e+00> : vector<8xf32>
    %245 = vector.multi_reduction <add>, %244, %cst_98 [1] : vector<8x128xf32> to vector<8xf32>
    %246 = vector.shape_cast %245 : vector<8xf32> to vector<8x1xf32>
    %247 = math.log %246 : vector<8x1xf32>
    %248 = vector.broadcast %247 : vector<8x1xf32> to vector<8x128xf32>
    %249 = arith.subf %243, %248 : vector<8x128xf32>
    %c0_99 = arith.constant 0 : index
    %c0_100 = arith.constant 0 : index
    %250 = vector.load %arg8[%c0_99, %c0_100] : memref<8x128xf32, #tpu.memory_space<vmem>>, vector<8x128xf32>
    tpu.vector_store %arg8[%c0_99, %c0_100], %249 {strides = array<i32>} : memref<8x128xf32, #tpu.memory_space<vmem>>, vector<8x128xf32>,
    return
  }
}

</mosaic_0001>

<llo_original>
// kernel: textrnn_forward.1
$region0: #{textrnn_forward.1}
  #allocation0 [shape = 'u32[]', space=smem, size = 0x4, offset = 0x4, fixed_abs, tag = 'smem constant byte address 0x4 - core index']
  #allocation1 [shape = 'u32[144,128]{1,0:T(1,128)}', space=vmem, size = 0x12000, scoped, tag = 'internal scratch']
  #allocation2 [shape = 'f32[8,8,128]{2,1,0:T(8,128)}', space=vmem, size = 0x8000, scoped, tag = 'scratch operand']
  #allocation3 [shape = 'f32[8,8,128]{2,1,0:T(8,128)}', space=vmem, size = 0x8000, scoped, tag = 'scratch operand']
  %s0 = inlined_call_operand.vmem [shape: f32[8,8,128], index: 0, kind: input, shape index: {}]
  %s1 = inlined_call_operand.vmem [shape: s32[8,1], index: 1, kind: input, shape index: {}]
  %s2 = inlined_call_operand.vmem [shape: f32[128,256], index: 2, kind: input, shape index: {}]
  %s3 = inlined_call_operand.vmem [shape: f32[128,128], index: 3, kind: input, shape index: {}]
  %s4 = inlined_call_operand.vmem [shape: f32[128,128], index: 4, kind: input, shape index: {}]
  %s5 = inlined_call_operand.vmem [shape: f32[1,256], index: 5, kind: input, shape index: {}]
  %s6 = inlined_call_operand.vmem [shape: f32[256,128], index: 6, kind: input, shape index: {}]
  %s7 = inlined_call_operand.vmem [shape: f32[1,128], index: 7, kind: input, shape index: {}]
  %s8 = inlined_call_operand.vmem [shape: f32[8,128], index: 8, kind: output, shape index: {}]
  %s9 = sld [smem:[#allocation0]]
  $region42: #{textrnn_forward.1} parent=0
    _
  %s11 = ssub.s32 1, %s9
  %s12 = scalar_select 0, %s11, %s9
  // Predicated region
  $region2: #{textrnn_forward.1} parent=0 // pred_check
    _
  $region3: #{textrnn_forward.1} parent=0 // pred_check_branch
    %14 = sbr.rel (0) target = $region5
  $region4: #{textrnn_forward.1} parent=0 // pred_region
    _
  $region5: #{textrnn_forward.1} parent=0 // pred_fallthru
    _
  // Predicated region
  $region6: #{textrnn_forward.1} parent=0 // pred_check
    _
  $region7: #{textrnn_forward.1} parent=0 // pred_check_branch
    %16 = sbr.rel (0) target = $region9
  $region8: #{textrnn_forward.1} parent=0 // pred_region
    _
  $region9: #{textrnn_forward.1} parent=0 // pred_fallthru
    _
  // Predicated region
  $region10: #{textrnn_forward.1} parent=0 // pred_check
    _
  $region11: #{textrnn_forward.1} parent=0 // pred_check_branch
    %18 = sbr.rel (0) target = $region13
  $region12: #{textrnn_forward.1} parent=0 // pred_region
    _
  $region13: #{textrnn_forward.1} parent=0 // pred_fallthru
    _
  // Predicated region
  $region14: #{textrnn_forward.1} parent=0 // pred_check
    _
  $region15: #{textrnn_forward.1} parent=0 // pred_check_branch
    %20 = sbr.rel (0) target = $region17
  $region16: #{textrnn_forward.1} parent=0 // pred_region
    _
  $region17: #{textrnn_forward.1} parent=0 // pred_fallthru
    _
  // Predicated region
  $region18: #{textrnn_forward.1} parent=0 // pred_check
    _
  $region19: #{textrnn_forward.1} parent=0 // pred_check_branch
    %22 = sbr.rel (0) target = $region21
  $region20: #{textrnn_forward.1} parent=0 // pred_region
    _
  $region21: #{textrnn_forward.1} parent=0 // pred_fallthru
    _
  // Predicated region
  $region22: #{textrnn_forward.1} parent=0 // pred_check
    _
  $region23: #{textrnn_forward.1} parent=0 // pred_check_branch
    %24 = sbr.rel (0) target = $region25
  $region24: #{textrnn_forward.1} parent=0 // pred_region
    _
  $region25: #{textrnn_forward.1} parent=0 // pred_fallthru
    _
  // Predicated region
  $region26: #{textrnn_forward.1} parent=0 // pred_check
    _
  $region27: #{textrnn_forward.1} parent=0 // pred_check_branch
    %26 = sbr.rel (0) target = $region29
  $region28: #{textrnn_forward.1} parent=0 // pred_region
    _
  $region29: #{textrnn_forward.1} parent=0 // pred_fallthru
    _
  // Predicated region
  $region30: #{textrnn_forward.1} parent=0 // pred_check
    _
  $region31: #{textrnn_forward.1} parent=0 // pred_check_branch
    %28 = sbr.rel (0) target = $region33
  $region32: #{textrnn_forward.1} parent=0 // pred_region
    _
  $region33: #{textrnn_forward.1} parent=0 // pred_fallthru
    _
  %v29 = vld [vmem:[%s0] sm:$0xff]
  %v30 = vld [vmem:[%s0 + $0x8] sm:$0xff]
  %v31 = vld [vmem:[%s0 + $0x10] sm:$0xff]
  %v32 = vld [vmem:[%s0 + $0x18] sm:$0xff]
  %v33 = vld [vmem:[%s0 + $0x20] sm:$0xff]
  %v34 = vld [vmem:[%s0 + $0x28] sm:$0xff]
  %v35 = vld [vmem:[%s0 + $0x30] sm:$0xff]
  %v36 = vld [vmem:[%s0 + $0x38] sm:$0xff]
  %v37 = vld [vmem:[%s2] sm:$0xff]
  %v38 = vld [vmem:[%s2 + $0x8] sm:$0xff]
  %v39 = vld [vmem:[%s2 + $0x10] sm:$0xff]
  %v40 = vld [vmem:[%s2 + $0x18] sm:$0xff]
  %v41 = vld [vmem:[%s2 + $0x20] sm:$0xff]
  %v42 = vld [vmem:[%s2 + $0x28] sm:$0xff]
  %v43 = vld [vmem:[%s2 + $0x30] sm:$0xff]
  %v44 = vld [vmem:[%s2 + $0x38] sm:$0xff]
  %v45 = vld [vmem:[%s2 + $0x40] sm:$0xff]
  %v46 = vld [vmem:[%s2 + $0x48] sm:$0xff]
  %v47 = vld [vmem:[%s2 + $0x50] sm:$0xff]
  %v48 = vld [vmem:[%s2 + $0x58] sm:$0xff]
  %v49 = vld [vmem:[%s2 + $0x60] sm:$0xff]
  %v50 = vld [vmem:[%s2 + $0x68] sm:$0xff]
  %v51 = vld [vmem:[%s2 + $0x70] sm:$0xff]
  %v52 = vld [vmem:[%s2 + $0x78] sm:$0xff]
  %v53 = vld [vmem:[%s2 + $0x80] sm:$0xff]
  %v54 = vld [vmem:[%s2 + $0x88] sm:$0xff]
  %v55 = vld [vmem:[%s2 + $0x90] sm:$0xff]
  %v56 = vld [vmem:[%s2 + $0x98] sm:$0xff]
  %v57 = vld [vmem:[%s2 + $0xa0] sm:$0xff]
  %v58 = vld [vmem:[%s2 + $0xa8] sm:$0xff]
  %v59 = vld [vmem:[%s2 + $0xb0] sm:$0xff]
  %v60 = vld [vmem:[%s2 + $0xb8] sm:$0xff]
  %v61 = vld [vmem:[%s2 + $0xc0] sm:$0xff]
  %v62 = vld [vmem:[%s2 + $0xc8] sm:$0xff]
  %v63 = vld [vmem:[%s2 + $0xd0] sm:$0xff]
  %v64 = vld [vmem:[%s2 + $0xd8] sm:$0xff]
  %v65 = vld [vmem:[%s2 + $0xe0] sm:$0xff]
  %v66 = vld [vmem:[%s2 + $0xe8] sm:$0xff]
  %v67 = vld [vmem:[%s2 + $0xf0] sm:$0xff]
  %v68 = vld [vmem:[%s2 + $0xf8] sm:$0xff]
  %v69 = vld [vmem:[%s5] sm:$0x3]
  %v71 = vlaneseq
  %v72 = vshrl.u32 %v71, 7
  %v73 = vsub.s32 0, %v72
  %v74 = vrot.slane %v69, %v73
  %v75 = vlaneseq
  %v76 = vshrl.u32 %v75, 7
  %v77 = vsub.s32 1, %v76
  %v78 = vrot.slane %v69, %v77
  %81 = vmatprep.subr.mxu0 %v38
  %82 = vmatpush1.msra.mxu0 %v37
  %83 = vmatprep.subr.mxu0 %v40
  %84 = vmatpush1.msra.mxu0 %v39
  %85 = vmatprep.subr.mxu0 %v42
  %86 = vmatpush1.msra.mxu0 %v41
  %87 = vmatprep.subr.mxu0 %v44
  %88 = vmatpush1.msra.mxu0 %v43
  %89 = vmatprep.subr.mxu0 %v46
  %90 = vmatpush1.msra.mxu0 %v45
  %91 = vmatprep.subr.mxu0 %v48
  %92 = vmatpush1.msra.mxu0 %v47
  %93 = vmatprep.subr.mxu0 %v50
  %94 = vmatpush1.msra.mxu0 %v49
  %95 = vmatprep.subr.mxu0 %v52
  %96 = vmatpush1.msra.mxu0 %v51
  %97 = vmatprep.subr.mxu0 %v54
  %98 = vmatpush1.msra.mxu0 %v53
  %99 = vmatprep.subr.mxu0 %v56
  %100 = vmatpush1.msra.mxu0 %v55
  %101 = vmatprep.subr.mxu0 %v58
  %102 = vmatpush1.msra.mxu0 %v57
  %103 = vmatprep.subr.mxu0 %v60
  %104 = vmatpush1.msra.mxu0 %v59
  %105 = vmatprep.subr.mxu0 %v62
  %106 = vmatpush1.msra.mxu0 %v61
  %107 = vmatprep.subr.mxu0 %v64
  %108 = vmatpush1.msra.mxu0 %v63
  %109 = vmatprep.subr.mxu0 %v66
  %110 = vmatpush1.msra.mxu0 %v65
  %111 = vmatprep.subr.mxu0 %v68
  %112 = vmatpush1.msra.mxu0 %v67
  %113 = vmatprep.subr.mxu0 0.0
  %114 = vmatpush1.msra.mxu0 0.0
  %115 = vmatprep.subr.mxu0 0.0
  %116 = vmatpush1.msra.mxu0 0.0
  %117 = vmatprep.subr.mxu0 0.0
  %118 = vmatpush1.msra.mxu0 0.0
  %119 = vmatprep.subr.mxu0 0.0
  %120 = vmatpush1.msra.mxu0 0.0
  %121 = vmatprep.subr.mxu0 0.0
  %122 = vmatpush1.msra.mxu0 0.0
  %123 = vmatprep.subr.mxu0 0.0
  %124 = vmatpush1.msra.mxu0 0.0
  %125 = vmatprep.subr.mxu0 0.0
  %126 = vmatpush1.msra.mxu0 0.0
  %127 = vmatprep.subr.mxu0 0.0
  %128 = vmatpush1.msra.mxu0 0.0
  %129 = vmatprep.subr.mxu0 0.0
  %130 = vmatpush1.msra.mxu0 0.0
  %131 = vmatprep.subr.mxu0 0.0
  %132 = vmatpush1.msra.mxu0 0.0
  %133 = vmatprep.subr.mxu0 0.0
  %134 = vmatpush1.msra.mxu0 0.0
  %135 = vmatprep.subr.mxu0 0.0
  %136 = vmatpush1.msra.mxu0 0.0
  %137 = vmatprep.subr.mxu0 0.0
  %138 = vmatpush1.msra.mxu0 0.0
  %139 = vmatprep.subr.mxu0 0.0
  %140 = vmatpush1.msra.mxu0 0.0
  %141 = vmatprep.subr.mxu0 0.0
  %142 = vmatpush1.msra.mxu0 0.0
  %143 = vmatprep.subr.mxu0 0.0
  %144 = vmatpush1.msra.mxu0 0.0
  %145 = vmatprep.mubr.f32.mxu0 0.0
  %146 = vmatmul.mubr.f32.gmra.mrb[0].mxu0 %v29
  %v147 = vpop.f32.mrb[0].mxu0
  %v148 = vadd.f32 %v74, %v147
  %v149 = vpop.f32.mrb[0].mxu0
  %v150 = vadd.f32 %v78, %v149
  %151 = vmatprep.mubr.f32.mxu0 0.0
  %152 = vmatmul.mubr.f32.gmra.mrb[0].mxu0 %v30
  %v153 = vpop.f32.mrb[0].mxu0
  %v154 = vadd.f32 %v74, %v153
  %v155 = vpop.f32.mrb[0].mxu0
  %v156 = vadd.f32 %v78, %v155
  %157 = vmatprep.mubr.f32.mxu0 0.0
  %158 = vmatmul.mubr.f32.gmra.mrb[0].mxu0 %v31
  %v159 = vpop.f32.mrb[0].mxu0
  %v160 = vadd.f32 %v74, %v159
  %v161 = vpop.f32.mrb[0].mxu0
  %v162 = vadd.f32 %v78, %v161
  %163 = vmatprep.mubr.f32.mxu0 0.0
  %164 = vmatmul.mubr.f32.gmra.mrb[0].mxu0 %v32
  %v165 = vpop.f32.mrb[0].mxu0
  %v166 = vadd.f32 %v74, %v165
  %v167 = vpop.f32.mrb[0].mxu0
  %v168 = vadd.f32 %v78, %v167
  %169 = vmatprep.mubr.f32.mxu0 0.0
  %170 = vmatmul.mubr.f32.gmra.mrb[0].mxu0 %v33
  %v171 = vpop.f32.mrb[0].mxu0
  %v172 = vadd.f32 %v74, %v171
  %v173 = vpop.f32.mrb[0].mxu0
  %v174 = vadd.f32 %v78, %v173
  %175 = vmatprep.mubr.f32.mxu0 0.0
  %176 = vmatmul.mubr.f32.gmra.mrb[0].mxu0 %v34
  %v177 = vpop.f32.mrb[0].mxu0
  %v178 = vadd.f32 %v74, %v177
  %v179 = vpop.f32.mrb[0].mxu0
  %v180 = vadd.f32 %v78, %v179
  %181 = vmatprep.mubr.f32.mxu0 0.0
  %182 = vmatmul.mubr.f32.gmra.mrb[0].mxu0 %v35
  %v183 = vpop.f32.mrb[0].mxu0
  %v184 = vadd.f32 %v74, %v183
  %v185 = vpop.f32.mrb[0].mxu0
  %v186 = vadd.f32 %v78, %v185
  %187 = vmatprep.mubr.f32.mxu0 0.0
  %188 = vmatmul.mubr.f32.gmra.mrb[0].mxu0 %v36
  %v189 = vpop.f32.mrb[0].mxu0
  %v190 = vadd.f32 %v74, %v189
  %v191 = vpop.f32.mrb[0].mxu0
  %v192 = vadd.f32 %v78, %v191
  %193 = vdwg.mxu0
  %194 = vst [vmem:[#allocation2] sm:$0xff] %v148
  %195 = vst [vmem:[#allocation2 + $0x8] sm:$0xff] %v154
  %196 = vst [vmem:[#allocation2 + $0x10] sm:$0xff] %v160
  %197 = vst [vmem:[#allocation2 + $0x18] sm:$0xff] %v166
  %198 = vst [vmem:[#allocation2 + $0x20] sm:$0xff] %v172
  %199 = vst [vmem:[#allocation2 + $0x28] sm:$0xff] %v178
  %200 = vst [vmem:[#allocation2 + $0x30] sm:$0xff] %v184
  %201 = vst [vmem:[#allocation2 + $0x38] sm:$0xff] %v190
  %202 = vst [vmem:[#allocation3] sm:$0xff] %v150
  %203 = vst [vmem:[#allocation3 + $0x8] sm:$0xff] %v156
  %204 = vst [vmem:[#allocation3 + $0x10] sm:$0xff] %v162
  %205 = vst [vmem:[#allocation3 + $0x18] sm:$0xff] %v168
  %206 = vst [vmem:[#allocation3 + $0x20] sm:$0xff] %v174
  %207 = vst [vmem:[#allocation3 + $0x28] sm:$0xff] %v180
  %208 = vst [vmem:[#allocation3 + $0x30] sm:$0xff] %v186
  %209 = vst [vmem:[#allocation3 + $0x38] sm:$0xff] %v192
  %v210 = vld [vmem:[%s1] sm:$0xff]
  %v211 = vld [vmem:[%s3] sm:$0xff]
  %v212 = vld [vmem:[%s3 + $0x8] sm:$0xff]
  %v213 = vld [vmem:[%s3 + $0x10] sm:$0xff]
  %v214 = vld [vmem:[%s3 + $0x18] sm:$0xff]
  %v215 = vld [vmem:[%s3 + $0x20] sm:$0xff]
  %v216 = vld [vmem:[%s3 + $0x28] sm:$0xff]
  %v217 = vld [vmem:[%s3 + $0x30] sm:$0xff]
  %v218 = vld [vmem:[%s3 + $0x38] sm:$0xff]
  %v219 = vld [vmem:[%s3 + $0x40] sm:$0xff]
  %v220 = vld [vmem:[%s3 + $0x48] sm:$0xff]
  %v221 = vld [vmem:[%s3 + $0x50] sm:$0xff]
  %v222 = vld [vmem:[%s3 + $0x58] sm:$0xff]
  %v223 = vld [vmem:[%s3 + $0x60] sm:$0xff]
  %v224 = vld [vmem:[%s3 + $0x68] sm:$0xff]
  %v225 = vld [vmem:[%s3 + $0x70] sm:$0xff]
  %v226 = vld [vmem:[%s3 + $0x78] sm:$0xff]
  %v227 = vld [vmem:[%s4] sm:$0xff]
  %v228 = vld [vmem:[%s4 + $0x8] sm:$0xff]
  %v229 = vld [vmem:[%s4 + $0x10] sm:$0xff]
  %v230 = vld [vmem:[%s4 + $0x18] sm:$0xff]
  %v231 = vld [vmem:[%s4 + $0x20] sm:$0xff]
  %v232 = vld [vmem:[%s4 + $0x28] sm:$0xff]
  %v233 = vld [vmem:[%s4 + $0x30] sm:$0xff]
  %v234 = vld [vmem:[%s4 + $0x38] sm:$0xff]
  %v235 = vld [vmem:[%s4 + $0x40] sm:$0xff]
  %v236 = vld [vmem:[%s4 + $0x48] sm:$0xff]
  %v237 = vld [vmem:[%s4 + $0x50] sm:$0xff]
  %v238 = vld [vmem:[%s4 + $0x58] sm:$0xff]
  %v239 = vld [vmem:[%s4 + $0x60] sm:$0xff]
  %v240 = vld [vmem:[%s4 + $0x68] sm:$0xff]
  %v241 = vld [vmem:[%s4 + $0x70] sm:$0xff]
  %v242 = vld [vmem:[%s4 + $0x78] sm:$0xff]
  %v243 = vld [vmem:[#allocation2] sm:$0xff]
  %s244 = scalar_lea.vmem [#allocation3], 56
  %v245 = vld [vmem:[%s244] sm:$0xff]
  %246 = vmatprep.subr.mxu0 0.0
  %247 = vmatpush1.msra.mxu0 %v211
  %248 = vmatprep.subr.mxu0 0.0
  %249 = vmatpush1.msra.mxu0 %v212
  %250 = vmatprep.subr.mxu0 0.0
  %251 = vmatpush1.msra.mxu0 %v213
  %252 = vmatprep.subr.mxu0 0.0
  %253 = vmatpush1.msra.mxu0 %v214
  %254 = vmatprep.subr.mxu0 0.0
  %255 = vmatpush1.msra.mxu0 %v215
  %256 = vmatprep.subr.mxu0 0.0
  %257 = vmatpush1.msra.mxu0 %v216
  %258 = vmatprep.subr.mxu0 0.0
  %259 = vmatpush1.msra.mxu0 %v217
  %260 = vmatprep.subr.mxu0 0.0
  %261 = vmatpush1.msra.mxu0 %v218
  %262 = vmatprep.subr.mxu0 0.0
  %263 = vmatpush1.msra.mxu0 %v219
  %264 = vmatprep.subr.mxu0 0.0
  %265 = vmatpush1.msra.mxu0 %v220
  %266 = vmatprep.subr.mxu0 0.0
  %267 = vmatpush1.msra.mxu0 %v221
  %268 = vmatprep.subr.mxu0 0.0
  %269 = vmatpush1.msra.mxu0 %v222
  %270 = vmatprep.subr.mxu0 0.0
  %271 = vmatpush1.msra.mxu0 %v223
  %272 = vmatprep.subr.mxu0 0.0
  %273 = vmatpush1.msra.mxu0 %v224
  %274 = vmatprep.subr.mxu0 0.0
  %275 = vmatpush1.msra.mxu0 %v225
  %276 = vmatprep.subr.mxu0 0.0
  %277 = vmatpush1.msra.mxu0 %v226
  %278 = vmatprep.subr.mxu0 0.0
  %279 = vmatpush1.msra.mxu0 0.0
  %280 = vmatprep.subr.mxu0 0.0
  %281 = vmatpush1.msra.mxu0 0.0
  %282 = vmatprep.subr.mxu0 0.0
  %283 = vmatpush1.msra.mxu0 0.0
  %284 = vmatprep.subr.mxu0 0.0
  %285 = vmatpush1.msra.mxu0 0.0
  %286 = vmatprep.subr.mxu0 0.0
  %287 = vmatpush1.msra.mxu0 0.0
  %288 = vmatprep.subr.mxu0 0.0
  %289 = vmatpush1.msra.mxu0 0.0
  %290 = vmatprep.subr.mxu0 0.0
  %291 = vmatpush1.msra.mxu0 0.0
  %292 = vmatprep.subr.mxu0 0.0
  %293 = vmatpush1.msra.mxu0 0.0
  %294 = vmatprep.subr.mxu0 0.0
  %295 = vmatpush1.msra.mxu0 0.0
  %296 = vmatprep.subr.mxu0 0.0
  %297 = vmatpush1.msra.mxu0 0.0
  %298 = vmatprep.subr.mxu0 0.0
  %299 = vmatpush1.msra.mxu0 0.0
  %300 = vmatprep.subr.mxu0 0.0
  %301 = vmatpush1.msra.mxu0 0.0
  %302 = vmatprep.subr.mxu0 0.0
  %303 = vmatpush1.msra.mxu0 0.0
  %304 = vmatprep.subr.mxu0 0.0
  %305 = vmatpush1.msra.mxu0 0.0
  %306 = vmatprep.subr.mxu0 0.0
  %307 = vmatpush1.msra.mxu0 0.0
  %308 = vmatprep.subr.mxu0 0.0
  %309 = vmatpush1.msra.mxu0 0.0
  %310 = vmatprep.mubr.f32.mxu0 0.0
  %311 = vmatmul.mubr.f32.gmra.mrb[0].mxu0 0.0
  %v312 = vpop.f32.mrb[0].mxu0
  %v313 = vadd.f32 0.0, %v312
  %v314 = vpop.f32.mrb[0].mxu0
  %315 = vdwg.mxu0
  %v316 = vadd.f32 %v243, %v313
  %v317 = vtanh.pop %v316
  %318 = vmatprep.subr.mxu0 0.0
  %319 = vmatpush1.msra.mxu0 %v227
  %320 = vmatprep.subr.mxu0 0.0
  %321 = vmatpush1.msra.mxu0 %v228
  %322 = vmatprep.subr.mxu0 0.0
  %323 = vmatpush1.msra.mxu0 %v229
  %324 = vmatprep.subr.mxu0 0.0
  %325 = vmatpush1.msra.mxu0 %v230
  %326 = vmatprep.subr.mxu0 0.0
  %327 = vmatpush1.msra.mxu0 %v231
  %328 = vmatprep.subr.mxu0 0.0
  %329 = vmatpush1.msra.mxu0 %v232
  %330 = vmatprep.subr.mxu0 0.0
  %331 = vmatpush1.msra.mxu0 %v233
  %332 = vmatprep.subr.mxu0 0.0
  %333 = vmatpush1.msra.mxu0 %v234
  %334 = vmatprep.subr.mxu0 0.0
  %335 = vmatpush1.msra.mxu0 %v235
  %336 = vmatprep.subr.mxu0 0.0
  %337 = vmatpush1.msra.mxu0 %v236
  %338 = vmatprep.subr.mxu0 0.0
  %339 = vmatpush1.msra.mxu0 %v237
  %340 = vmatprep.subr.mxu0 0.0
  %341 = vmatpush1.msra.mxu0 %v238
  %342 = vmatprep.subr.mxu0 0.0
  %343 = vmatpush1.msra.mxu0 %v239
  %344 = vmatprep.subr.mxu0 0.0
  %345 = vmatpush1.msra.mxu0 %v240
  %346 = vmatprep.subr.mxu0 0.0
  %347 = vmatpush1.msra.mxu0 %v241
  %348 = vmatprep.subr.mxu0 0.0
  %349 = vmatpush1.msra.mxu0 %v242
  %350 = vmatprep.subr.mxu0 0.0
  %351 = vmatpush1.msra.mxu0 0.0
  %352 = vmatprep.subr.mxu0 0.0
  %353 = vmatpush1.msra.mxu0 0.0
  %354 = vmatprep.subr.mxu0 0.0
  %355 = vmatpush1.msra.mxu0 0.0
  %356 = vmatprep.subr.mxu0 0.0
  %357 = vmatpush1.msra.mxu0 0.0
  %358 = vmatprep.subr.mxu0 0.0
  %359 = vmatpush1.msra.mxu0 0.0
  %360 = vmatprep.subr.mxu0 0.0
  %361 = vmatpush1.msra.mxu0 0.0
  %362 = vmatprep.subr.mxu0 0.0
  %363 = vmatpush1.msra.mxu0 0.0
  %364 = vmatprep.subr.mxu0 0.0
  %365 = vmatpush1.msra.mxu0 0.0
  %366 = vmatprep.subr.mxu0 0.0
  %367 = vmatpush1.msra.mxu0 0.0
  %368 = vmatprep.subr.mxu0 0.0
  %369 = vmatpush1.msra.mxu0 0.0
  %370 = vmatprep.subr.mxu0 0.0
  %371 = vmatpush1.msra.mxu0 0.0
  %372 = vmatprep.subr.mxu0 0.0
  %373 = vmatpush1.msra.mxu0 0.0
  %374 = vmatprep.subr.mxu0 0.0
  %375 = vmatpush1.msra.mxu0 0.0
  %376 = vmatprep.subr.mxu0 0.0
  %377 = vmatpush1.msra.mxu0 0.0
  %378 = vmatprep.subr.mxu0 0.0
  %379 = vmatpush1.msra.mxu0 0.0
  %380 = vmatprep.subr.mxu0 0.0
  %381 = vmatpush1.msra.mxu0 0.0
  %382 = vmatprep.mubr.f32.mxu0 0.0
  %383 = vmatmul.mubr.f32.gmra.mrb[0].mxu0 0.0
  %v384 = vpop.f32.mrb[0].mxu0
  %v385 = vadd.f32 0.0, %v384
  %v386 = vpop.f32.mrb[0].mxu0
  %387 = vdwg.mxu0
  %v388 = vadd.f32 %v245, %v385
  %v389 = vtanh.pop %v388
  %vm390 = vcmp.gt.s32.totalorder %v210, 0
  %v391 = vsel %vm390, 1, 0
  %392 = vset.pattern.permute.xlu0 0
  %393 = vperm.xlu0 %392, %v391
  %v394 = vpop.permute.xlu0 %393
  %vm395 = vcmp.eq.s32.totalorder %v394, 1
  %v396 = vsel %vm395, %v317, 0.0
  %vm397 = vcmp.gt.s32.totalorder %v210, 7
  %v398 = vsel %vm397, 1, 0
  %399 = vset.pattern.permute.xlu0 0
  %400 = vperm.xlu0 %399, %v398
  %v401 = vpop.permute.xlu0 %400
  %vm402 = vcmp.eq.s32.totalorder %v401, 1
  %v403 = vsel %vm402, %v389, 0.0
  %s404 = scalar_lea.vmem [#allocation2], 8
  %v405 = vld [vmem:[%s404] sm:$0xff]
  %s406 = scalar_lea.vmem [#allocation3], 48
  %v407 = vld [vmem:[%s406] sm:$0xff]
  %408 = vmatprep.subr.mxu0 0.0
  %409 = vmatpush1.msra.mxu0 %v211
  %410 = vmatprep.subr.mxu0 0.0
  %411 = vmatpush1.msra.mxu0 %v212
  %412 = vmatprep.subr.mxu0 0.0
  %413 = vmatpush1.msra.mxu0 %v213
  %414 = vmatprep.subr.mxu0 0.0
  %415 = vmatpush1.msra.mxu0 %v214
  %416 = vmatprep.subr.mxu0 0.0
  %417 = vmatpush1.msra.mxu0 %v215
  %418 = vmatprep.subr.mxu0 0.0
  %419 = vmatpush1.msra.mxu0 %v216
  %420 = vmatprep.subr.mxu0 0.0
  %421 = vmatpush1.msra.mxu0 %v217
  %422 = vmatprep.subr.mxu0 0.0
  %423 = vmatpush1.msra.mxu0 %v218
  %424 = vmatprep.subr.mxu0 0.0
  %425 = vmatpush1.msra.mxu0 %v219
  %426 = vmatprep.subr.mxu0 0.0
  %427 = vmatpush1.msra.mxu0 %v220
  %428 = vmatprep.subr.mxu0 0.0
  %429 = vmatpush1.msra.mxu0 %v221
  %430 = vmatprep.subr.mxu0 0.0
  %431 = vmatpush1.msra.mxu0 %v222
  %432 = vmatprep.subr.mxu0 0.0
  %433 = vmatpush1.msra.mxu0 %v223
  %434 = vmatprep.subr.mxu0 0.0
  %435 = vmatpush1.msra.mxu0 %v224
  %436 = vmatprep.subr.mxu0 0.0
  %437 = vmatpush1.msra.mxu0 %v225
  %438 = vmatprep.subr.mxu0 0.0
  %439 = vmatpush1.msra.mxu0 %v226
  %440 = vmatprep.subr.mxu0 0.0
  %441 = vmatpush1.msra.mxu0 0.0
  %442 = vmatprep.subr.mxu0 0.0
  %443 = vmatpush1.msra.mxu0 0.0
  %444 = vmatprep.subr.mxu0 0.0
  %445 = vmatpush1.msra.mxu0 0.0
  %446 = vmatprep.subr.mxu0 0.0
  %447 = vmatpush1.msra.mxu0 0.0
  %448 = vmatprep.subr.mxu0 0.0
  %449 = vmatpush1.msra.mxu0 0.0
  %450 = vmatprep.subr.mxu0 0.0
  %451 = vmatpush1.msra.mxu0 0.0
  %452 = vmatprep.subr.mxu0 0.0
  %453 = vmatpush1.msra.mxu0 0.0
  %454 = vmatprep.subr.mxu0 0.0
  %455 = vmatpush1.msra.mxu0 0.0
  %456 = vmatprep.subr.mxu0 0.0
  %457 = vmatpush1.msra.mxu0 0.0
  %458 = vmatprep.subr.mxu0 0.0
  %459 = vmatpush1.msra.mxu0 0.0
  %460 = vmatprep.subr.mxu0 0.0
  %461 = vmatpush1.msra.mxu0 0.0
  %462 = vmatprep.subr.mxu0 0.0
  %463 = vmatpush1.msra.mxu0 0.0
  %464 = vmatprep.subr.mxu0 0.0
  %465 = vmatpush1.msra.mxu0 0.0
  %466 = vmatprep.subr.mxu0 0.0
  %467 = vmatpush1.msra.mxu0 0.0
  %468 = vmatprep.subr.mxu0 0.0
  %469 = vmatpush1.msra.mxu0 0.0
  %470 = vmatprep.subr.mxu0 0.0
  %471 = vmatpush1.msra.mxu0 0.0
  %472 = vmatprep.mubr.f32.mxu0 0.0
  %473 = vmatmul.mubr.f32.gmra.mrb[0].mxu0 %v317
  %v474 = vpop.f32.mrb[0].mxu0
  %v475 = vadd.f32 0.0, %v474
  %v476 = vpop.f32.mrb[0].mxu0
  %477 = vdwg.mxu0
  %v478 = vadd.f32 %v405, %v475
  %v479 = vtanh.pop %v478
  %480 = vmatprep.subr.mxu0 0.0
  %481 = vmatpush1.msra.mxu0 %v227
  %482 = vmatprep.subr.mxu0 0.0
  %483 = vmatpush1.msra.mxu0 %v228
  %484 = vmatprep.subr.mxu0 0.0
  %485 = vmatpush1.msra.mxu0 %v229
  %486 = vmatprep.subr.mxu0 0.0
  %487 = vmatpush1.msra.mxu0 %v230
  %488 = vmatprep.subr.mxu0 0.0
  %489 = vmatpush1.msra.mxu0 %v231
  %490 = vmatprep.subr.mxu0 0.0
  %491 = vmatpush1.msra.mxu0 %v232
  %492 = vmatprep.subr.mxu0 0.0
  %493 = vmatpush1.msra.mxu0 %v233
  %494 = vmatprep.subr.mxu0 0.0
  %495 = vmatpush1.msra.mxu0 %v234
  %496 = vmatprep.subr.mxu0 0.0
  %497 = vmatpush1.msra.mxu0 %v235
  %498 = vmatprep.subr.mxu0 0.0
  %499 = vmatpush1.msra.mxu0 %v236
  %500 = vmatprep.subr.mxu0 0.0
  %501 = vmatpush1.msra.mxu0 %v237
  %502 = vmatprep.subr.mxu0 0.0
  %503 = vmatpush1.msra.mxu0 %v238
  %504 = vmatprep.subr.mxu0 0.0
  %505 = vmatpush1.msra.mxu0 %v239
  %506 = vmatprep.subr.mxu0 0.0
  %507 = vmatpush1.msra.mxu0 %v240
  %508 = vmatprep.subr.mxu0 0.0
  %509 = vmatpush1.msra.mxu0 %v241
  %510 = vmatprep.subr.mxu0 0.0
  %511 = vmatpush1.msra.mxu0 %v242
  %512 = vmatprep.subr.mxu0 0.0
  %513 = vmatpush1.msra.mxu0 0.0
  %514 = vmatprep.subr.mxu0 0.0
  %515 = vmatpush1.msra.mxu0 0.0
  %516 = vmatprep.subr.mxu0 0.0
  %517 = vmatpush1.msra.mxu0 0.0
  %518 = vmatprep.subr.mxu0 0.0
  %519 = vmatpush1.msra.mxu0 0.0
  %520 = vmatprep.subr.mxu0 0.0
  %521 = vmatpush1.msra.mxu0 0.0
  %522 = vmatprep.subr.mxu0 0.0
  %523 = vmatpush1.msra.mxu0 0.0
  %524 = vmatprep.subr.mxu0 0.0
  %525 = vmatpush1.msra.mxu0 0.0
  %526 = vmatprep.subr.mxu0 0.0
  %527 = vmatpush1.msra.mxu0 0.0
  %528 = vmatprep.subr.mxu0 0.0
  %529 = vmatpush1.msra.mxu0 0.0
  %530 = vmatprep.subr.mxu0 0.0
  %531 = vmatpush1.msra.mxu0 0.0
  %532 = vmatprep.subr.mxu0 0.0
  %533 = vmatpush1.msra.mxu0 0.0
  %534 = vmatprep.subr.mxu0 0.0
  %535 = vmatpush1.msra.mxu0 0.0
  %536 = vmatprep.subr.mxu0 0.0
  %537 = vmatpush1.msra.mxu0 0.0
  %538 = vmatprep.subr.mxu0 0.0
  %539 = vmatpush1.msra.mxu0 0.0
  %540 = vmatprep.subr.mxu0 0.0
  %541 = vmatpush1.msra.mxu0 0.0
  %542 = vmatprep.subr.mxu0 0.0
  %543 = vmatpush1.msra.mxu0 0.0
  %544 = vmatprep.mubr.f32.mxu0 0.0
  %545 = vmatmul.mubr.f32.gmra.mrb[0].mxu0 %v403
  %v546 = vpop.f32.mrb[0].mxu0
  %v547 = vadd.f32 0.0, %v546
  %v548 = vpop.f32.mrb[0].mxu0
  %549 = vdwg.mxu0
  %v550 = vadd.f32 %v407, %v547
  %v551 = vtanh.pop %v550
  %vm552 = vcmp.gt.s32.totalorder %v210, 1
  %v553 = vsel %vm552, 1, 0
  %554 = vset.pattern.permute.xlu0 0
  %555 = vperm.xlu0 %554, %v553
  %v556 = vpop.permute.xlu0 %555
  %vm557 = vcmp.eq.s32.totalorder %v556, 1
  %v558 = vsel %vm557, %v479, 0.0
  %vm559 = vcmp.gt.s32.totalorder %v210, 6
  %v560 = vsel %vm559, 1, 0
  %561 = vset.pattern.permute.xlu0 0
  %562 = vperm.xlu0 %561, %v560
  %v563 = vpop.permute.xlu0 %562
  %vm564 = vcmp.eq.s32.totalorder %v563, 1
  %v565 = vsel %vm564, %v551, 0.0
  %v566 = vmax.f32 %v396, %v558
  %v567 = vmax.f32 %v403, %v565
  %s568 = scalar_lea.vmem [#allocation2], 16
  %v569 = vld [vmem:[%s568] sm:$0xff]
  %s570 = scalar_lea.vmem [#allocation3], 40
  %v571 = vld [vmem:[%s570] sm:$0xff]
  %572 = vmatprep.subr.mxu0 0.0
  %573 = vmatpush1.msra.mxu0 %v211
  %574 = vmatprep.subr.mxu0 0.0
  %575 = vmatpush1.msra.mxu0 %v212
  %576 = vmatprep.subr.mxu0 0.0
  %577 = vmatpush1.msra.mxu0 %v213
  %578 = vmatprep.subr.mxu0 0.0
  %579 = vmatpush1.msra.mxu0 %v214
  %580 = vmatprep.subr.mxu0 0.0
  %581 = vmatpush1.msra.mxu0 %v215
  %582 = vmatprep.subr.mxu0 0.0
  %583 = vmatpush1.msra.mxu0 %v216
  %584 = vmatprep.subr.mxu0 0.0
  %585 = vmatpush1.msra.mxu0 %v217
  %586 = vmatprep.subr.mxu0 0.0
  %587 = vmatpush1.msra.mxu0 %v218
  %588 = vmatprep.subr.mxu0 0.0
  %589 = vmatpush1.msra.mxu0 %v219
  %590 = vmatprep.subr.mxu0 0.0
  %591 = vmatpush1.msra.mxu0 %v220
  %592 = vmatprep.subr.mxu0 0.0
  %593 = vmatpush1.msra.mxu0 %v221
  %594 = vmatprep.subr.mxu0 0.0
  %595 = vmatpush1.msra.mxu0 %v222
  %596 = vmatprep.subr.mxu0 0.0
  %597 = vmatpush1.msra.mxu0 %v223
  %598 = vmatprep.subr.mxu0 0.0
  %599 = vmatpush1.msra.mxu0 %v224
  %600 = vmatprep.subr.mxu0 0.0
  %601 = vmatpush1.msra.mxu0 %v225
  %602 = vmatprep.subr.mxu0 0.0
  %603 = vmatpush1.msra.mxu0 %v226
  %604 = vmatprep.subr.mxu0 0.0
  %605 = vmatpush1.msra.mxu0 0.0
  %606 = vmatprep.subr.mxu0 0.0
  %607 = vmatpush1.msra.mxu0 0.0
  %608 = vmatprep.subr.mxu0 0.0
  %609 = vmatpush1.msra.mxu0 0.0
  %610 = vmatprep.subr.mxu0 0.0
  %611 = vmatpush1.msra.mxu0 0.0
  %612 = vmatprep.subr.mxu0 0.0
  %613 = vmatpush1.msra.mxu0 0.0
  %614 = vmatprep.subr.mxu0 0.0
  %615 = vmatpush1.msra.mxu0 0.0
  %616 = vmatprep.subr.mxu0 0.0
  %617 = vmatpush1.msra.mxu0 0.0
  %618 = vmatprep.subr.mxu0 0.0
  %619 = vmatpush1.msra.mxu0 0.0
  %620 = vmatprep.subr.mxu0 0.0
  %621 = vmatpush1.msra.mxu0 0.0
  %622 = vmatprep.subr.mxu0 0.0
  %623 = vmatpush1.msra.mxu0 0.0
  %624 = vmatprep.subr.mxu0 0.0
  %625 = vmatpush1.msra.mxu0 0.0
  %626 = vmatprep.subr.mxu0 0.0
  %627 = vmatpush1.msra.mxu0 0.0
  %628 = vmatprep.subr.mxu0 0.0
  %629 = vmatpush1.msra.mxu0 0.0
  %630 = vmatprep.subr.mxu0 0.0
  %631 = vmatpush1.msra.mxu0 0.0
  %632 = vmatprep.subr.mxu0 0.0
  %633 = vmatpush1.msra.mxu0 0.0
  %634 = vmatprep.subr.mxu0 0.0
  %635 = vmatpush1.msra.mxu0 0.0
  %636 = vmatprep.mubr.f32.mxu0 0.0
  %637 = vmatmul.mubr.f32.gmra.mrb[0].mxu0 %v479
  %v638 = vpop.f32.mrb[0].mxu0
  %v639 = vadd.f32 0.0, %v638
  %v640 = vpop.f32.mrb[0].mxu0
  %641 = vdwg.mxu0
  %v642 = vadd.f32 %v569, %v639
  %v643 = vtanh.pop %v642
  %644 = vmatprep.subr.mxu0 0.0
  %645 = vmatpush1.msra.mxu0 %v227
  %646 = vmatprep.subr.mxu0 0.0
  %647 = vmatpush1.msra.mxu0 %v228
  %648 = vmatprep.subr.mxu0 0.0
  %649 = vmatpush1.msra.mxu0 %v229
  %650 = vmatprep.subr.mxu0 0.0
  %651 = vmatpush1.msra.mxu0 %v230
  %652 = vmatprep.subr.mxu0 0.0
  %653 = vmatpush1.msra.mxu0 %v231
  %654 = vmatprep.subr.mxu0 0.0
  %655 = vmatpush1.msra.mxu0 %v232
  %656 = vmatprep.subr.mxu0 0.0
  %657 = vmatpush1.msra.mxu0 %v233
  %658 = vmatprep.subr.mxu0 0.0
  %659 = vmatpush1.msra.mxu0 %v234
  %660 = vmatprep.subr.mxu0 0.0
  %661 = vmatpush1.msra.mxu0 %v235
  %662 = vmatprep.subr.mxu0 0.0
  %663 = vmatpush1.msra.mxu0 %v236
  %664 = vmatprep.subr.mxu0 0.0
  %665 = vmatpush1.msra.mxu0 %v237
  %666 = vmatprep.subr.mxu0 0.0
  %667 = vmatpush1.msra.mxu0 %v238
  %668 = vmatprep.subr.mxu0 0.0
  %669 = vmatpush1.msra.mxu0 %v239
  %670 = vmatprep.subr.mxu0 0.0
  %671 = vmatpush1.msra.mxu0 %v240
  %672 = vmatprep.subr.mxu0 0.0
  %673 = vmatpush1.msra.mxu0 %v241
  %674 = vmatprep.subr.mxu0 0.0
  %675 = vmatpush1.msra.mxu0 %v242
  %676 = vmatprep.subr.mxu0 0.0
  %677 = vmatpush1.msra.mxu0 0.0
  %678 = vmatprep.subr.mxu0 0.0
  %679 = vmatpush1.msra.mxu0 0.0
  %680 = vmatprep.subr.mxu0 0.0
  %681 = vmatpush1.msra.mxu0 0.0
  %682 = vmatprep.subr.mxu0 0.0
  %683 = vmatpush1.msra.mxu0 0.0
  %684 = vmatprep.subr.mxu0 0.0
  %685 = vmatpush1.msra.mxu0 0.0
  %686 = vmatprep.subr.mxu0 0.0
  %687 = vmatpush1.msra.mxu0 0.0
  %688 = vmatprep.subr.mxu0 0.0
  %689 = vmatpush1.msra.mxu0 0.0
  %690 = vmatprep.subr.mxu0 0.0
  %691 = vmatpush1.msra.mxu0 0.0
  %692 = vmatprep.subr.mxu0 0.0
  %693 = vmatpush1.msra.mxu0 0.0
  %694 = vmatprep.subr.mxu0 0.0
  %695 = vmatpush1.msra.mxu0 0.0
  %696 = vmatprep.subr.mxu0 0.0
  %697 = vmatpush1.msra.mxu0 0.0
  %698 = vmatprep.subr.mxu0 0.0
  %699 = vmatpush1.msra.mxu0 0.0
  %700 = vmatprep.subr.mxu0 0.0
  %701 = vmatpush1.msra.mxu0 0.0
  %702 = vmatprep.subr.mxu0 0.0
  %703 = vmatpush1.msra.mxu0 0.0
  %704 = vmatprep.subr.mxu0 0.0
  %705 = vmatpush1.msra.mxu0 0.0
  %706 = vmatprep.subr.mxu0 0.0
  %707 = vmatpush1.msra.mxu0 0.0
  %708 = vmatprep.mubr.f32.mxu0 0.0
  %709 = vmatmul.mubr.f32.gmra.mrb[0].mxu0 %v565
  %v710 = vpop.f32.mrb[0].mxu0
  %v711 = vadd.f32 0.0, %v710
  %v712 = vpop.f32.mrb[0].mxu0
  %713 = vdwg.mxu0
  %v714 = vadd.f32 %v571, %v711
  %v715 = vtanh.pop %v714
  %vm716 = vcmp.gt.s32.totalorder %v210, 2
  %v717 = vsel %vm716, 1, 0
  %718 = vset.pattern.permute.xlu0 0
  %719 = vperm.xlu0 %718, %v717
  %v720 = vpop.permute.xlu0 %719
  %vm721 = vcmp.eq.s32.totalorder %v720, 1
  %v722 = vsel %vm721, %v643, 0.0
  %vm723 = vcmp.gt.s32.totalorder %v210, 5
  %v724 = vsel %vm723, 1, 0
  %725 = vset.pattern.permute.xlu0 0
  %726 = vperm.xlu0 %725, %v724
  %v727 = vpop.permute.xlu0 %726
  %vm728 = vcmp.eq.s32.totalorder %v727, 1
  %v729 = vsel %vm728, %v715, 0.0
  %v730 = vmax.f32 %v566, %v722
  %v731 = vmax.f32 %v567, %v729
  %s732 = scalar_lea.vmem [#allocation2], 24
  %v733 = vld [vmem:[%s732] sm:$0xff]
  %s734 = scalar_lea.vmem [#allocation3], 32
  %v735 = vld [vmem:[%s734] sm:$0xff]
  %736 = vmatprep.subr.mxu0 0.0
  %737 = vmatpush1.msra.mxu0 %v211
  %738 = vmatprep.subr.mxu0 0.0
  %739 = vmatpush1.msra.mxu0 %v212
  %740 = vmatprep.subr.mxu0 0.0
  %741 = vmatpush1.msra.mxu0 %v213
  %742 = vmatprep.subr.mxu0 0.0
  %743 = vmatpush1.msra.mxu0 %v214
  %744 = vmatprep.subr.mxu0 0.0
  %745 = vmatpush1.msra.mxu0 %v215
  %746 = vmatprep.subr.mxu0 0.0
  %747 = vmatpush1.msra.mxu0 %v216
  %748 = vmatprep.subr.mxu0 0.0
  %749 = vmatpush1.msra.mxu0 %v217
  %750 = vmatprep.subr.mxu0 0.0
  %751 = vmatpush1.msra.mxu0 %v218
  %752 = vmatprep.subr.mxu0 0.0
  %753 = vmatpush1.msra.mxu0 %v219
  %754 = vmatprep.subr.mxu0 0.0
  %755 = vmatpush1.msra.mxu0 %v220
  %756 = vmatprep.subr.mxu0 0.0
  %757 = vmatpush1.msra.mxu0 %v221
  %758 = vmatprep.subr.mxu0 0.0
  %759 = vmatpush1.msra.mxu0 %v222
  %760 = vmatprep.subr.mxu0 0.0
  %761 = vmatpush1.msra.mxu0 %v223
  %762 = vmatprep.subr.mxu0 0.0
  %763 = vmatpush1.msra.mxu0 %v224
  %764 = vmatprep.subr.mxu0 0.0
  %765 = vmatpush1.msra.mxu0 %v225
  %766 = vmatprep.subr.mxu0 0.0
  %767 = vmatpush1.msra.mxu0 %v226
  %768 = vmatprep.subr.mxu0 0.0
  %769 = vmatpush1.msra.mxu0 0.0
  %770 = vmatprep.subr.mxu0 0.0
  %771 = vmatpush1.msra.mxu0 0.0
  %772 = vmatprep.subr.mxu0 0.0
  %773 = vmatpush1.msra.mxu0 0.0
  %774 = vmatprep.subr.mxu0 0.0
  %775 = vmatpush1.msra.mxu0 0.0
  %776 = vmatprep.subr.mxu0 0.0
  %777 = vmatpush1.msra.mxu0 0.0
  %778 = vmatprep.subr.mxu0 0.0
  %779 = vmatpush1.msra.mxu0 0.0
  %780 = vmatprep.subr.mxu0 0.0
  %781 = vmatpush1.msra.mxu0 0.0
  %782 = vmatprep.subr.mxu0 0.0
  %783 = vmatpush1.msra.mxu0 0.0
  %784 = vmatprep.subr.mxu0 0.0
  %785 = vmatpush1.msra.mxu0 0.0
  %786 = vmatprep.subr.mxu0 0.0
  %787 = vmatpush1.msra.mxu0 0.0
  %788 = vmatprep.subr.mxu0 0.0
  %789 = vmatpush1.msra.mxu0 0.0
  %790 = vmatprep.subr.mxu0 0.0
  %791 = vmatpush1.msra.mxu0 0.0
  %792 = vmatprep.subr.mxu0 0.0
  %793 = vmatpush1.msra.mxu0 0.0
  %794 = vmatprep.subr.mxu0 0.0
  %795 = vmatpush1.msra.mxu0 0.0
  %796 = vmatprep.subr.mxu0 0.0
  %797 = vmatpush1.msra.mxu0 0.0
  %798 = vmatprep.subr.mxu0 0.0
  %799 = vmatpush1.msra.mxu0 0.0
  %800 = vmatprep.mubr.f32.mxu0 0.0
  %801 = vmatmul.mubr.f32.gmra.mrb[0].mxu0 %v643
  %v802 = vpop.f32.mrb[0].mxu0
  %v803 = vadd.f32 0.0, %v802
  %v804 = vpop.f32.mrb[0].mxu0
  %805 = vdwg.mxu0
  %v806 = vadd.f32 %v733, %v803
  %v807 = vtanh.pop %v806
  %808 = vmatprep.subr.mxu0 0.0
  %809 = vmatpush1.msra.mxu0 %v227
  %810 = vmatprep.subr.mxu0 0.0
  %811 = vmatpush1.msra.mxu0 %v228
  %812 = vmatprep.subr.mxu0 0.0
  %813 = vmatpush1.msra.mxu0 %v229
  %814 = vmatprep.subr.mxu0 0.0
  %815 = vmatpush1.msra.mxu0 %v230
  %816 = vmatprep.subr.mxu0 0.0
  %817 = vmatpush1.msra.mxu0 %v231
  %818 = vmatprep.subr.mxu0 0.0
  %819 = vmatpush1.msra.mxu0 %v232
  %820 = vmatprep.subr.mxu0 0.0
  %821 = vmatpush1.msra.mxu0 %v233
  %822 = vmatprep.subr.mxu0 0.0
  %823 = vmatpush1.msra.mxu0 %v234
  %824 = vmatprep.subr.mxu0 0.0
  %825 = vmatpush1.msra.mxu0 %v235
  %826 = vmatprep.subr.mxu0 0.0
  %827 = vmatpush1.msra.mxu0 %v236
  %828 = vmatprep.subr.mxu0 0.0
  %829 = vmatpush1.msra.mxu0 %v237
  %830 = vmatprep.subr.mxu0 0.0
  %831 = vmatpush1.msra.mxu0 %v238
  %832 = vmatprep.subr.mxu0 0.0
  %833 = vmatpush1.msra.mxu0 %v239
  %834 = vmatprep.subr.mxu0 0.0
  %835 = vmatpush1.msra.mxu0 %v240
  %836 = vmatprep.subr.mxu0 0.0
  %837 = vmatpush1.msra.mxu0 %v241
  %838 = vmatprep.subr.mxu0 0.0
  %839 = vmatpush1.msra.mxu0 %v242
  %840 = vmatprep.subr.mxu0 0.0
  %841 = vmatpush1.msra.mxu0 0.0
  %842 = vmatprep.subr.mxu0 0.0
  %843 = vmatpush1.msra.mxu0 0.0
  %844 = vmatprep.subr.mxu0 0.0
  %845 = vmatpush1.msra.mxu0 0.0
  %846 = vmatprep.subr.mxu0 0.0
  %847 = vmatpush1.msra.mxu0 0.0
  %848 = vmatprep.subr.mxu0 0.0
  %849 = vmatpush1.msra.mxu0 0.0
  %850 = vmatprep.subr.mxu0 0.0
  %851 = vmatpush1.msra.mxu0 0.0
  %852 = vmatprep.subr.mxu0 0.0
  %853 = vmatpush1.msra.mxu0 0.0
  %854 = vmatprep.subr.mxu0 0.0
  %855 = vmatpush1.msra.mxu0 0.0
  %856 = vmatprep.subr.mxu0 0.0
  %857 = vmatpush1.msra.mxu0 0.0
  %858 = vmatprep.subr.mxu0 0.0
  %859 = vmatpush1.msra.mxu0 0.0
  %860 = vmatprep.subr.mxu0 0.0
  %861 = vmatpush1.msra.mxu0 0.0
  %862 = vmatprep.subr.mxu0 0.0
  %863 = vmatpush1.msra.mxu0 0.0
  %864 = vmatprep.subr.mxu0 0.0
  %865 = vmatpush1.msra.mxu0 0.0
  %866 = vmatprep.subr.mxu0 0.0
  %867 = vmatpush1.msra.mxu0 0.0
  %868 = vmatprep.subr.mxu0 0.0
  %869 = vmatpush1.msra.mxu0 0.0
  %870 = vmatprep.subr.mxu0 0.0
  %871 = vmatpush1.msra.mxu0 0.0
  %872 = vmatprep.mubr.f32.mxu0 0.0
  %873 = vmatmul.mubr.f32.gmra.mrb[0].mxu0 %v729
  %v874 = vpop.f32.mrb[0].mxu0
  %v875 = vadd.f32 0.0, %v874
  %v876 = vpop.f32.mrb[0].mxu0
  %877 = vdwg.mxu0
  %v878 = vadd.f32 %v735, %v875
  %v879 = vtanh.pop %v878
  %vm880 = vcmp.gt.s32.totalorder %v210, 3
  %v881 = vsel %vm880, 1, 0
  %882 = vset.pattern.permute.xlu0 0
  %883 = vperm.xlu0 %882, %v881
  %v884 = vpop.permute.xlu0 %883
  %vm885 = vcmp.eq.s32.totalorder %v884, 1
  %v886 = vsel %vm885, %v807, 0.0
  %vm887 = vcmp.gt.s32.totalorder %v210, 4
  %v888 = vsel %vm887, 1, 0
  %889 = vset.pattern.permute.xlu0 0
  %890 = vperm.xlu0 %889, %v888
  %v891 = vpop.permute.xlu0 %890
  %vm892 = vcmp.eq.s32.totalorder %v891, 1
  %v893 = vsel %vm892, %v879, 0.0
  %v894 = vmax.f32 %v730, %v886
  %v895 = vmax.f32 %v731, %v893
  %s896 = scalar_lea.vmem [#allocation2], 32
  %v897 = vld [vmem:[%s896] sm:$0xff]
  %s898 = scalar_lea.vmem [#allocation3], 24
  %v899 = vld [vmem:[%s898] sm:$0xff]
  %900 = vmatprep.subr.mxu0 0.0
  %901 = vmatpush1.msra.mxu0 %v211
  %902 = vmatprep.subr.mxu0 0.0
  %903 = vmatpush1.msra.mxu0 %v212
  %904 = vmatprep.subr.mxu0 0.0
  %905 = vmatpush1.msra.mxu0 %v213
  %906 = vmatprep.subr.mxu0 0.0
  %907 = vmatpush1.msra.mxu0 %v214
  %908 = vmatprep.subr.mxu0 0.0
  %909 = vmatpush1.msra.mxu0 %v215
  %910 = vmatprep.subr.mxu0 0.0
  %911 = vmatpush1.msra.mxu0 %v216
  %912 = vmatprep.subr.mxu0 0.0
  %913 = vmatpush1.msra.mxu0 %v217
  %914 = vmatprep.subr.mxu0 0.0
  %915 = vmatpush1.msra.mxu0 %v218
  %916 = vmatprep.subr.mxu0 0.0
  %917 = vmatpush1.msra.mxu0 %v219
  %918 = vmatprep.subr.mxu0 0.0
  %919 = vmatpush1.msra.mxu0 %v220
  %920 = vmatprep.subr.mxu0 0.0
  %921 = vmatpush1.msra.mxu0 %v221
  %922 = vmatprep.subr.mxu0 0.0
  %923 = vmatpush1.msra.mxu0 %v222
  %924 = vmatprep.subr.mxu0 0.0
  %925 = vmatpush1.msra.mxu0 %v223
  %926 = vmatprep.subr.mxu0 0.0
  %927 = vmatpush1.msra.mxu0 %v224
  %928 = vmatprep.subr.mxu0 0.0
  %929 = vmatpush1.msra.mxu0 %v225
  %930 = vmatprep.subr.mxu0 0.0
  %931 = vmatpush1.msra.mxu0 %v226
  %932 = vmatprep.subr.mxu0 0.0
  %933 = vmatpush1.msra.mxu0 0.0
  %934 = vmatprep.subr.mxu0 0.0
  %935 = vmatpush1.msra.mxu0 0.0
  %936 = vmatprep.subr.mxu0 0.0
  %937 = vmatpush1.msra.mxu0 0.0
  %938 = vmatprep.subr.mxu0 0.0
  %939 = vmatpush1.msra.mxu0 0.0
  %940 = vmatprep.subr.mxu0 0.0
  %941 = vmatpush1.msra.mxu0 0.0
  %942 = vmatprep.subr.mxu0 0.0
  %943 = vmatpush1.msra.mxu0 0.0
  %944 = vmatprep.subr.mxu0 0.0
  %945 = vmatpush1.msra.mxu0 0.0
  %946 = vmatprep.subr.mxu0 0.0
  %947 = vmatpush1.msra.mxu0 0.0
  %948 = vmatprep.subr.mxu0 0.0
  %949 = vmatpush1.msra.mxu0 0.0
  %950 = vmatprep.subr.mxu0 0.0
  %951 = vmatpush1.msra.mxu0 0.0
  %952 = vmatprep.subr.mxu0 0.0
  %953 = vmatpush1.msra.mxu0 0.0
  %954 = vmatprep.subr.mxu0 0.0
  %955 = vmatpush1.msra.mxu0 0.0
  %956 = vmatprep.subr.mxu0 0.0
  %957 = vmatpush1.msra.mxu0 0.0
  %958 = vmatprep.subr.mxu0 0.0
  %959 = vmatpush1.msra.mxu0 0.0
  %960 = vmatprep.subr.mxu0 0.0
  %961 = vmatpush1.msra.mxu0 0.0
  %962 = vmatprep.subr.mxu0 0.0
  %963 = vmatpush1.msra.mxu0 0.0
  %964 = vmatprep.mubr.f32.mxu0 0.0
  %965 = vmatmul.mubr.f32.gmra.mrb[0].mxu0 %v807
  %v966 = vpop.f32.mrb[0].mxu0
  %v967 = vadd.f32 0.0, %v966
  %v968 = vpop.f32.mrb[0].mxu0
  %969 = vdwg.mxu0
  %v970 = vadd.f32 %v897, %v967
  %v971 = vtanh.pop %v970
  %972 = vmatprep.subr.mxu0 0.0
  %973 = vmatpush1.msra.mxu0 %v227
  %974 = vmatprep.subr.mxu0 0.0
  %975 = vmatpush1.msra.mxu0 %v228
  %976 = vmatprep.subr.mxu0 0.0
  %977 = vmatpush1.msra.mxu0 %v229
  %978 = vmatprep.subr.mxu0 0.0
  %979 = vmatpush1.msra.mxu0 %v230
  %980 = vmatprep.subr.mxu0 0.0
  %981 = vmatpush1.msra.mxu0 %v231
  %982 = vmatprep.subr.mxu0 0.0
  %983 = vmatpush1.msra.mxu0 %v232
  %984 = vmatprep.subr.mxu0 0.0
  %985 = vmatpush1.msra.mxu0 %v233
  %986 = vmatprep.subr.mxu0 0.0
  %987 = vmatpush1.msra.mxu0 %v234
  %988 = vmatprep.subr.mxu0 0.0
  %989 = vmatpush1.msra.mxu0 %v235
  %990 = vmatprep.subr.mxu0 0.0
  %991 = vmatpush1.msra.mxu0 %v236
  %992 = vmatprep.subr.mxu0 0.0
  %993 = vmatpush1.msra.mxu0 %v237
  %994 = vmatprep.subr.mxu0 0.0
  %995 = vmatpush1.msra.mxu0 %v238
  %996 = vmatprep.subr.mxu0 0.0
  %997 = vmatpush1.msra.mxu0 %v239
  %998 = vmatprep.subr.mxu0 0.0
  %999 = vmatpush1.msra.mxu0 %v240
  %1000 = vmatprep.subr.mxu0 0.0
  %1001 = vmatpush1.msra.mxu0 %v241
  %1002 = vmatprep.subr.mxu0 0.0
  %1003 = vmatpush1.msra.mxu0 %v242
  %1004 = vmatprep.subr.mxu0 0.0
  %1005 = vmatpush1.msra.mxu0 0.0
  %1006 = vmatprep.subr.mxu0 0.0
  %1007 = vmatpush1.msra.mxu0 0.0
  %1008 = vmatprep.subr.mxu0 0.0
  %1009 = vmatpush1.msra.mxu0 0.0
  %1010 = vmatprep.subr.mxu0 0.0
  %1011 = vmatpush1.msra.mxu0 0.0
  %1012 = vmatprep.subr.mxu0 0.0
  %1013 = vmatpush1.msra.mxu0 0.0
  %1014 = vmatprep.subr.mxu0 0.0
  %1015 = vmatpush1.msra.mxu0 0.0
  %1016 = vmatprep.subr.mxu0 0.0
  %1017 = vmatpush1.msra.mxu0 0.0
  %1018 = vmatprep.subr.mxu0 0.0
  %1019 = vmatpush1.msra.mxu0 0.0
  %1020 = vmatprep.subr.mxu0 0.0
  %1021 = vmatpush1.msra.mxu0 0.0
  %1022 = vmatprep.subr.mxu0 0.0
  %1023 = vmatpush1.msra.mxu0 0.0
  %1024 = vmatprep.subr.mxu0 0.0
  %1025 = vmatpush1.msra.mxu0 0.0
  %1026 = vmatprep.subr.mxu0 0.0
  %1027 = vmatpush1.msra.mxu0 0.0
  %1028 = vmatprep.subr.mxu0 0.0
  %1029 = vmatpush1.msra.mxu0 0.0
  %1030 = vmatprep.subr.mxu0 0.0
  %1031 = vmatpush1.msra.mxu0 0.0
  %1032 = vmatprep.subr.mxu0 0.0
  %1033 = vmatpush1.msra.mxu0 0.0
  %1034 = vmatprep.subr.mxu0 0.0
  %1035 = vmatpush1.msra.mxu0 0.0
  %1036 = vmatprep.mubr.f32.mxu0 0.0
  %1037 = vmatmul.mubr.f32.gmra.mrb[0].mxu0 %v893
  %v1038 = vpop.f32.mrb[0].mxu0
  %v1039 = vadd.f32 0.0, %v1038
  %v1040 = vpop.f32.mrb[0].mxu0
  %1041 = vdwg.mxu0
  %v1042 = vadd.f32 %v899, %v1039
  %v1043 = vtanh.pop %v1042
  %v1044 = vsel %vm892, %v971, 0.0
  %v1045 = vsel %vm885, %v1043, 0.0
  %v1046 = vmax.f32 %v894, %v1044
  %v1047 = vmax.f32 %v895, %v1045
  %s1048 = scalar_lea.vmem [#allocation2], 40
  %v1049 = vld [vmem:[%s1048] sm:$0xff]
  %s1050 = scalar_lea.vmem [#allocation3], 16
  %v1051 = vld [vmem:[%s1050] sm:$0xff]
  %1052 = vmatprep.subr.mxu0 0.0
  %1053 = vmatpush1.msra.mxu0 %v211
  %1054 = vmatprep.subr.mxu0 0.0
  %1055 = vmatpush1.msra.mxu0 %v212
  %1056 = vmatprep.subr.mxu0 0.0
  %1057 = vmatpush1.msra.mxu0 %v213
  %1058 = vmatprep.subr.mxu0 0.0
  %1059 = vmatpush1.msra.mxu0 %v214
  %1060 = vmatprep.subr.mxu0 0.0
  %1061 = vmatpush1.msra.mxu0 %v215
  %1062 = vmatprep.subr.mxu0 0.0
  %1063 = vmatpush1.msra.mxu0 %v216
  %1064 = vmatprep.subr.mxu0 0.0
  %1065 = vmatpush1.msra.mxu0 %v217
  %1066 = vmatprep.subr.mxu0 0.0
  %1067 = vmatpush1.msra.mxu0 %v218
  %1068 = vmatprep.subr.mxu0 0.0
  %1069 = vmatpush1.msra.mxu0 %v219
  %1070 = vmatprep.subr.mxu0 0.0
  %1071 = vmatpush1.msra.mxu0 %v220
  %1072 = vmatprep.subr.mxu0 0.0
  %1073 = vmatpush1.msra.mxu0 %v221
  %1074 = vmatprep.subr.mxu0 0.0
  %1075 = vmatpush1.msra.mxu0 %v222
  %1076 = vmatprep.subr.mxu0 0.0
  %1077 = vmatpush1.msra.mxu0 %v223
  %1078 = vmatprep.subr.mxu0 0.0
  %1079 = vmatpush1.msra.mxu0 %v224
  %1080 = vmatprep.subr.mxu0 0.0
  %1081 = vmatpush1.msra.mxu0 %v225
  %1082 = vmatprep.subr.mxu0 0.0
  %1083 = vmatpush1.msra.mxu0 %v226
  %1084 = vmatprep.subr.mxu0 0.0
  %1085 = vmatpush1.msra.mxu0 0.0
  %1086 = vmatprep.subr.mxu0 0.0
  %1087 = vmatpush1.msra.mxu0 0.0
  %1088 = vmatprep.subr.mxu0 0.0
  %1089 = vmatpush1.msra.mxu0 0.0
  %1090 = vmatprep.subr.mxu0 0.0
  %1091 = vmatpush1.msra.mxu0 0.0
  %1092 = vmatprep.subr.mxu0 0.0
  %1093 = vmatpush1.msra.mxu0 0.0
  %1094 = vmatprep.subr.mxu0 0.0
  %1095 = vmatpush1.msra.mxu0 0.0
  %1096 = vmatprep.subr.mxu0 0.0
  %1097 = vmatpush1.msra.mxu0 0.0
  %1098 = vmatprep.subr.mxu0 0.0
  %1099 = vmatpush1.msra.mxu0 0.0
  %1100 = vmatprep.subr.mxu0 0.0
  %1101 = vmatpush1.msra.mxu0 0.0
  %1102 = vmatprep.subr.mxu0 0.0
  %1103 = vmatpush1.msra.mxu0 0.0
  %1104 = vmatprep.subr.mxu0 0.0
  %1105 = vmatpush1.msra.mxu0 0.0
  %1106 = vmatprep.subr.mxu0 0.0
  %1107 = vmatpush1.msra.mxu0 0.0
  %1108 = vmatprep.subr.mxu0 0.0
  %1109 = vmatpush1.msra.mxu0 0.0
  %1110 = vmatprep.subr.mxu0 0.0
  %1111 = vmatpush1.msra.mxu0 0.0
  %1112 = vmatprep.subr.mxu0 0.0
  %1113 = vmatpush1.msra.mxu0 0.0
  %1114 = vmatprep.subr.mxu0 0.0
  %1115 = vmatpush1.msra.mxu0 0.0
  %1116 = vmatprep.mubr.f32.mxu0 0.0
  %1117 = vmatmul.mubr.f32.gmra.mrb[0].mxu0 %v971
  %v1118 = vpop.f32.mrb[0].mxu0
  %v1119 = vadd.f32 0.0, %v1118
  %v1120 = vpop.f32.mrb[0].mxu0
  %1121 = vdwg.mxu0
  %v1122 = vadd.f32 %v1049, %v1119
  %v1123 = vtanh.pop %v1122
  %1124 = vmatprep.subr.mxu0 0.0
  %1125 = vmatpush1.msra.mxu0 %v227
  %1126 = vmatprep.subr.mxu0 0.0
  %1127 = vmatpush1.msra.mxu0 %v228
  %1128 = vmatprep.subr.mxu0 0.0
  %1129 = vmatpush1.msra.mxu0 %v229
  %1130 = vmatprep.subr.mxu0 0.0
  %1131 = vmatpush1.msra.mxu0 %v230
  %1132 = vmatprep.subr.mxu0 0.0
  %1133 = vmatpush1.msra.mxu0 %v231
  %1134 = vmatprep.subr.mxu0 0.0
  %1135 = vmatpush1.msra.mxu0 %v232
  %1136 = vmatprep.subr.mxu0 0.0
  %1137 = vmatpush1.msra.mxu0 %v233
  %1138 = vmatprep.subr.mxu0 0.0
  %1139 = vmatpush1.msra.mxu0 %v234
  %1140 = vmatprep.subr.mxu0 0.0
  %1141 = vmatpush1.msra.mxu0 %v235
  %1142 = vmatprep.subr.mxu0 0.0
  %1143 = vmatpush1.msra.mxu0 %v236
  %1144 = vmatprep.subr.mxu0 0.0
  %1145 = vmatpush1.msra.mxu0 %v237
  %1146 = vmatprep.subr.mxu0 0.0
  %1147 = vmatpush1.msra.mxu0 %v238
  %1148 = vmatprep.subr.mxu0 0.0
  %1149 = vmatpush1.msra.mxu0 %v239
  %1150 = vmatprep.subr.mxu0 0.0
  %1151 = vmatpush1.msra.mxu0 %v240
  %1152 = vmatprep.subr.mxu0 0.0
  %1153 = vmatpush1.msra.mxu0 %v241
  %1154 = vmatprep.subr.mxu0 0.0
  %1155 = vmatpush1.msra.mxu0 %v242
  %1156 = vmatprep.subr.mxu0 0.0
  %1157 = vmatpush1.msra.mxu0 0.0
  %1158 = vmatprep.subr.mxu0 0.0
  %1159 = vmatpush1.msra.mxu0 0.0
  %1160 = vmatprep.subr.mxu0 0.0
  %1161 = vmatpush1.msra.mxu0 0.0
  %1162 = vmatprep.subr.mxu0 0.0
  %1163 = vmatpush1.msra.mxu0 0.0
  %1164 = vmatprep.subr.mxu0 0.0
  %1165 = vmatpush1.msra.mxu0 0.0
  %1166 = vmatprep.subr.mxu0 0.0
  %1167 = vmatpush1.msra.mxu0 0.0
  %1168 = vmatprep.subr.mxu0 0.0
  %1169 = vmatpush1.msra.mxu0 0.0
  %1170 = vmatprep.subr.mxu0 0.0
  %1171 = vmatpush1.msra.mxu0 0.0
  %1172 = vmatprep.subr.mxu0 0.0
  %1173 = vmatpush1.msra.mxu0 0.0
  %1174 = vmatprep.subr.mxu0 0.0
  %1175 = vmatpush1.msra.mxu0 0.0
  %1176 = vmatprep.subr.mxu0 0.0
  %1177 = vmatpush1.msra.mxu0 0.0
  %1178 = vmatprep.subr.mxu0 0.0
  %1179 = vmatpush1.msra.mxu0 0.0
  %1180 = vmatprep.subr.mxu0 0.0
  %1181 = vmatpush1.msra.mxu0 0.0
  %1182 = vmatprep.subr.mxu0 0.0
  %1183 = vmatpush1.msra.mxu0 0.0
  %1184 = vmatprep.subr.mxu0 0.0
  %1185 = vmatpush1.msra.mxu0 0.0
  %1186 = vmatprep.subr.mxu0 0.0
  %1187 = vmatpush1.msra.mxu0 0.0
  %1188 = vmatprep.mubr.f32.mxu0 0.0
  %1189 = vmatmul.mubr.f32.gmra.mrb[0].mxu0 %v1045
  %v1190 = vpop.f32.mrb[0].mxu0
  %v1191 = vadd.f32 0.0, %v1190
  %v1192 = vpop.f32.mrb[0].mxu0
  %1193 = vdwg.mxu0
  %v1194 = vadd.f32 %v1051, %v1191
  %v1195 = vtanh.pop %v1194
  %v1196 = vsel %vm728, %v1123, 0.0
  %v1197 = vsel %vm721, %v1195, 0.0
  %v1198 = vmax.f32 %v1046, %v1196
  %v1199 = vmax.f32 %v1047, %v1197
  %s1200 = scalar_lea.vmem [#allocation2], 48
  %v1201 = vld [vmem:[%s1200] sm:$0xff]
  %s1202 = scalar_lea.vmem [#allocation3], 8
  %v1203 = vld [vmem:[%s1202] sm:$0xff]
  %1204 = vmatprep.subr.mxu0 0.0
  %1205 = vmatpush1.msra.mxu0 %v211
  %1206 = vmatprep.subr.mxu0 0.0
  %1207 = vmatpush1.msra.mxu0 %v212
  %1208 = vmatprep.subr.mxu0 0.0
  %1209 = vmatpush1.msra.mxu0 %v213
  %1210 = vmatprep.subr.mxu0 0.0
  %1211 = vmatpush1.msra.mxu0 %v214
  %1212 = vmatprep.subr.mxu0 0.0
  %1213 = vmatpush1.msra.mxu0 %v215
  %1214 = vmatprep.subr.mxu0 0.0
  %1215 = vmatpush1.msra.mxu0 %v216
  %1216 = vmatprep.subr.mxu0 0.0
  %1217 = vmatpush1.msra.mxu0 %v217
  %1218 = vmatprep.subr.mxu0 0.0
  %1219 = vmatpush1.msra.mxu0 %v218
  %1220 = vmatprep.subr.mxu0 0.0
  %1221 = vmatpush1.msra.mxu0 %v219
  %1222 = vmatprep.subr.mxu0 0.0
  %1223 = vmatpush1.msra.mxu0 %v220
  %1224 = vmatprep.subr.mxu0 0.0
  %1225 = vmatpush1.msra.mxu0 %v221
  %1226 = vmatprep.subr.mxu0 0.0
  %1227 = vmatpush1.msra.mxu0 %v222
  %1228 = vmatprep.subr.mxu0 0.0
  %1229 = vmatpush1.msra.mxu0 %v223
  %1230 = vmatprep.subr.mxu0 0.0
  %1231 = vmatpush1.msra.mxu0 %v224
  %1232 = vmatprep.subr.mxu0 0.0
  %1233 = vmatpush1.msra.mxu0 %v225
  %1234 = vmatprep.subr.mxu0 0.0
  %1235 = vmatpush1.msra.mxu0 %v226
  %1236 = vmatprep.subr.mxu0 0.0
  %1237 = vmatpush1.msra.mxu0 0.0
  %1238 = vmatprep.subr.mxu0 0.0
  %1239 = vmatpush1.msra.mxu0 0.0
  %1240 = vmatprep.subr.mxu0 0.0
  %1241 = vmatpush1.msra.mxu0 0.0
  %1242 = vmatprep.subr.mxu0 0.0
  %1243 = vmatpush1.msra.mxu0 0.0
  %1244 = vmatprep.subr.mxu0 0.0
  %1245 = vmatpush1.msra.mxu0 0.0
  %1246 = vmatprep.subr.mxu0 0.0
  %1247 = vmatpush1.msra.mxu0 0.0
  %1248 = vmatprep.subr.mxu0 0.0
  %1249 = vmatpush1.msra.mxu0 0.0
  %1250 = vmatprep.subr.mxu0 0.0
  %1251 = vmatpush1.msra.mxu0 0.0
  %1252 = vmatprep.subr.mxu0 0.0
  %1253 = vmatpush1.msra.mxu0 0.0
  %1254 = vmatprep.subr.mxu0 0.0
  %1255 = vmatpush1.msra.mxu0 0.0
  %1256 = vmatprep.subr.mxu0 0.0
  %1257 = vmatpush1.msra.mxu0 0.0
  %1258 = vmatprep.subr.mxu0 0.0
  %1259 = vmatpush1.msra.mxu0 0.0
  %1260 = vmatprep.subr.mxu0 0.0
  %1261 = vmatpush1.msra.mxu0 0.0
  %1262 = vmatprep.subr.mxu0 0.0
  %1263 = vmatpush1.msra.mxu0 0.0
  %1264 = vmatprep.subr.mxu0 0.0
  %1265 = vmatpush1.msra.mxu0 0.0
  %1266 = vmatprep.subr.mxu0 0.0
  %1267 = vmatpush1.msra.mxu0 0.0
  %1268 = vmatprep.mubr.f32.mxu0 0.0
  %1269 = vmatmul.mubr.f32.gmra.mrb[0].mxu0 %v1123
  %v1270 = vpop.f32.mrb[0].mxu0
  %v1271 = vadd.f32 0.0, %v1270
  %v1272 = vpop.f32.mrb[0].mxu0
  %1273 = vdwg.mxu0
  %v1274 = vadd.f32 %v1201, %v1271
  %v1275 = vtanh.pop %v1274
  %1276 = vmatprep.subr.mxu0 0.0
  %1277 = vmatpush1.msra.mxu0 %v227
  %1278 = vmatprep.subr.mxu0 0.0
  %1279 = vmatpush1.msra.mxu0 %v228
  %1280 = vmatprep.subr.mxu0 0.0
  %1281 = vmatpush1.msra.mxu0 %v229
  %1282 = vmatprep.subr.mxu0 0.0
  %1283 = vmatpush1.msra.mxu0 %v230
  %1284 = vmatprep.subr.mxu0 0.0
  %1285 = vmatpush1.msra.mxu0 %v231
  %1286 = vmatprep.subr.mxu0 0.0
  %1287 = vmatpush1.msra.mxu0 %v232
  %1288 = vmatprep.subr.mxu0 0.0
  %1289 = vmatpush1.msra.mxu0 %v233
  %1290 = vmatprep.subr.mxu0 0.0
  %1291 = vmatpush1.msra.mxu0 %v234
  %1292 = vmatprep.subr.mxu0 0.0
  %1293 = vmatpush1.msra.mxu0 %v235
  %1294 = vmatprep.subr.mxu0 0.0
  %1295 = vmatpush1.msra.mxu0 %v236
  %1296 = vmatprep.subr.mxu0 0.0
  %1297 = vmatpush1.msra.mxu0 %v237
  %1298 = vmatprep.subr.mxu0 0.0
  %1299 = vmatpush1.msra.mxu0 %v238
  %1300 = vmatprep.subr.mxu0 0.0
  %1301 = vmatpush1.msra.mxu0 %v239
  %1302 = vmatprep.subr.mxu0 0.0
  %1303 = vmatpush1.msra.mxu0 %v240
  %1304 = vmatprep.subr.mxu0 0.0
  %1305 = vmatpush1.msra.mxu0 %v241
  %1306 = vmatprep.subr.mxu0 0.0
  %1307 = vmatpush1.msra.mxu0 %v242
  %1308 = vmatprep.subr.mxu0 0.0
  %1309 = vmatpush1.msra.mxu0 0.0
  %1310 = vmatprep.subr.mxu0 0.0
  %1311 = vmatpush1.msra.mxu0 0.0
  %1312 = vmatprep.subr.mxu0 0.0
  %1313 = vmatpush1.msra.mxu0 0.0
  %1314 = vmatprep.subr.mxu0 0.0
  %1315 = vmatpush1.msra.mxu0 0.0
  %1316 = vmatprep.subr.mxu0 0.0
  %1317 = vmatpush1.msra.mxu0 0.0
  %1318 = vmatprep.subr.mxu0 0.0
  %1319 = vmatpush1.msra.mxu0 0.0
  %1320 = vmatprep.subr.mxu0 0.0
  %1321 = vmatpush1.msra.mxu0 0.0
  %1322 = vmatprep.subr.mxu0 0.0
  %1323 = vmatpush1.msra.mxu0 0.0
  %1324 = vmatprep.subr.mxu0 0.0
  %1325 = vmatpush1.msra.mxu0 0.0
  %1326 = vmatprep.subr.mxu0 0.0
  %1327 = vmatpush1.msra.mxu0 0.0
  %1328 = vmatprep.subr.mxu0 0.0
  %1329 = vmatpush1.msra.mxu0 0.0
  %1330 = vmatprep.subr.mxu0 0.0
  %1331 = vmatpush1.msra.mxu0 0.0
  %1332 = vmatprep.subr.mxu0 0.0
  %1333 = vmatpush1.msra.mxu0 0.0
  %1334 = vmatprep.subr.mxu0 0.0
  %1335 = vmatpush1.msra.mxu0 0.0
  %1336 = vmatprep.subr.mxu0 0.0
  %1337 = vmatpush1.msra.mxu0 0.0
  %1338 = vmatprep.subr.mxu0 0.0
  %1339 = vmatpush1.msra.mxu0 0.0
  %1340 = vmatprep.mubr.f32.mxu0 0.0
  %1341 = vmatmul.mubr.f32.gmra.mrb[0].mxu0 %v1197
  %v1342 = vpop.f32.mrb[0].mxu0
  %v1343 = vadd.f32 0.0, %v1342
  %v1344 = vpop.f32.mrb[0].mxu0
  %1345 = vdwg.mxu0
  %v1346 = vadd.f32 %v1203, %v1343
  %v1347 = vtanh.pop %v1346
  %v1348 = vsel %vm564, %v1275, 0.0
  %v1349 = vsel %vm557, %v1347, 0.0
  %v1350 = vmax.f32 %v1198, %v1348
  %v1351 = vmax.f32 %v1199, %v1349
  %s1352 = scalar_lea.vmem [#allocation2], 56
  %v1353 = vld [vmem:[%s1352] sm:$0xff]
  %v1354 = vld [vmem:[#allocation3] sm:$0xff]
  %1355 = vmatprep.subr.mxu0 0.0
  %1356 = vmatpush1.msra.mxu0 %v211
  %1357 = vmatprep.subr.mxu0 0.0
  %1358 = vmatpush1.msra.mxu0 %v212
  %1359 = vmatprep.subr.mxu0 0.0
  %1360 = vmatpush1.msra.mxu0 %v213
  %1361 = vmatprep.subr.mxu0 0.0
  %1362 = vmatpush1.msra.mxu0 %v214
  %1363 = vmatprep.subr.mxu0 0.0
  %1364 = vmatpush1.msra.mxu0 %v215
  %1365 = vmatprep.subr.mxu0 0.0
  %1366 = vmatpush1.msra.mxu0 %v216
  %1367 = vmatprep.subr.mxu0 0.0
  %1368 = vmatpush1.msra.mxu0 %v217
  %1369 = vmatprep.subr.mxu0 0.0
  %1370 = vmatpush1.msra.mxu0 %v218
  %1371 = vmatprep.subr.mxu0 0.0
  %1372 = vmatpush1.msra.mxu0 %v219
  %1373 = vmatprep.subr.mxu0 0.0
  %1374 = vmatpush1.msra.mxu0 %v220
  %1375 = vmatprep.subr.mxu0 0.0
  %1376 = vmatpush1.msra.mxu0 %v221
  %1377 = vmatprep.subr.mxu0 0.0
  %1378 = vmatpush1.msra.mxu0 %v222
  %1379 = vmatprep.subr.mxu0 0.0
  %1380 = vmatpush1.msra.mxu0 %v223
  %1381 = vmatprep.subr.mxu0 0.0
  %1382 = vmatpush1.msra.mxu0 %v224
  %1383 = vmatprep.subr.mxu0 0.0
  %1384 = vmatpush1.msra.mxu0 %v225
  %1385 = vmatprep.subr.mxu0 0.0
  %1386 = vmatpush1.msra.mxu0 %v226
  %1387 = vmatprep.subr.mxu0 0.0
  %1388 = vmatpush1.msra.mxu0 0.0
  %1389 = vmatprep.subr.mxu0 0.0
  %1390 = vmatpush1.msra.mxu0 0.0
  %1391 = vmatprep.subr.mxu0 0.0
  %1392 = vmatpush1.msra.mxu0 0.0
  %1393 = vmatprep.subr.mxu0 0.0
  %1394 = vmatpush1.msra.mxu0 0.0
  %1395 = vmatprep.subr.mxu0 0.0
  %1396 = vmatpush1.msra.mxu0 0.0
  %1397 = vmatprep.subr.mxu0 0.0
  %1398 = vmatpush1.msra.mxu0 0.0
  %1399 = vmatprep.subr.mxu0 0.0
  %1400 = vmatpush1.msra.mxu0 0.0
  %1401 = vmatprep.subr.mxu0 0.0
  %1402 = vmatpush1.msra.mxu0 0.0
  %1403 = vmatprep.subr.mxu0 0.0
  %1404 = vmatpush1.msra.mxu0 0.0
  %1405 = vmatprep.subr.mxu0 0.0
  %1406 = vmatpush1.msra.mxu0 0.0
  %1407 = vmatprep.subr.mxu0 0.0
  %1408 = vmatpush1.msra.mxu0 0.0
  %1409 = vmatprep.subr.mxu0 0.0
  %1410 = vmatpush1.msra.mxu0 0.0
  %1411 = vmatprep.subr.mxu0 0.0
  %1412 = vmatpush1.msra.mxu0 0.0
  %1413 = vmatprep.subr.mxu0 0.0
  %1414 = vmatpush1.msra.mxu0 0.0
  %1415 = vmatprep.subr.mxu0 0.0
  %1416 = vmatpush1.msra.mxu0 0.0
  %1417 = vmatprep.subr.mxu0 0.0
  %1418 = vmatpush1.msra.mxu0 0.0
  %1419 = vmatprep.mubr.f32.mxu0 0.0
  %1420 = vmatmul.mubr.f32.gmra.mrb[0].mxu0 %v1275
  %v1421 = vpop.f32.mrb[0].mxu0
  %v1422 = vadd.f32 0.0, %v1421
  %v1423 = vpop.f32.mrb[0].mxu0
  %1424 = vdwg.mxu0
  %v1425 = vadd.f32 %v1353, %v1422
  %v1426 = vtanh.pop %v1425
  %1427 = vmatprep.subr.mxu0 0.0
  %1428 = vmatpush1.msra.mxu0 %v227
  %1429 = vmatprep.subr.mxu0 0.0
  %1430 = vmatpush1.msra.mxu0 %v228
  %1431 = vmatprep.subr.mxu0 0.0
  %1432 = vmatpush1.msra.mxu0 %v229
  %1433 = vmatprep.subr.mxu0 0.0
  %1434 = vmatpush1.msra.mxu0 %v230
  %1435 = vmatprep.subr.mxu0 0.0
  %1436 = vmatpush1.msra.mxu0 %v231
  %1437 = vmatprep.subr.mxu0 0.0
  %1438 = vmatpush1.msra.mxu0 %v232
  %1439 = vmatprep.subr.mxu0 0.0
  %1440 = vmatpush1.msra.mxu0 %v233
  %1441 = vmatprep.subr.mxu0 0.0
  %1442 = vmatpush1.msra.mxu0 %v234
  %1443 = vmatprep.subr.mxu0 0.0
  %1444 = vmatpush1.msra.mxu0 %v235
  %1445 = vmatprep.subr.mxu0 0.0
  %1446 = vmatpush1.msra.mxu0 %v236
  %1447 = vmatprep.subr.mxu0 0.0
  %1448 = vmatpush1.msra.mxu0 %v237
  %1449 = vmatprep.subr.mxu0 0.0
  %1450 = vmatpush1.msra.mxu0 %v238
  %1451 = vmatprep.subr.mxu0 0.0
  %1452 = vmatpush1.msra.mxu0 %v239
  %1453 = vmatprep.subr.mxu0 0.0
  %1454 = vmatpush1.msra.mxu0 %v240
  %1455 = vmatprep.subr.mxu0 0.0
  %1456 = vmatpush1.msra.mxu0 %v241
  %1457 = vmatprep.subr.mxu0 0.0
  %1458 = vmatpush1.msra.mxu0 %v242
  %1459 = vmatprep.subr.mxu0 0.0
  %1460 = vmatpush1.msra.mxu0 0.0
  %1461 = vmatprep.subr.mxu0 0.0
  %1462 = vmatpush1.msra.mxu0 0.0
  %1463 = vmatprep.subr.mxu0 0.0
  %1464 = vmatpush1.msra.mxu0 0.0
  %1465 = vmatprep.subr.mxu0 0.0
  %1466 = vmatpush1.msra.mxu0 0.0
  %1467 = vmatprep.subr.mxu0 0.0
  %1468 = vmatpush1.msra.mxu0 0.0
  %1469 = vmatprep.subr.mxu0 0.0
  %1470 = vmatpush1.msra.mxu0 0.0
  %1471 = vmatprep.subr.mxu0 0.0
  %1472 = vmatpush1.msra.mxu0 0.0
  %1473 = vmatprep.subr.mxu0 0.0
  %1474 = vmatpush1.msra.mxu0 0.0
  %1475 = vmatprep.subr.mxu0 0.0
  %1476 = vmatpush1.msra.mxu0 0.0
  %1477 = vmatprep.subr.mxu0 0.0
  %1478 = vmatpush1.msra.mxu0 0.0
  %1479 = vmatprep.subr.mxu0 0.0
  %1480 = vmatpush1.msra.mxu0 0.0
  %1481 = vmatprep.subr.mxu0 0.0
  %1482 = vmatpush1.msra.mxu0 0.0
  %1483 = vmatprep.subr.mxu0 0.0
  %1484 = vmatpush1.msra.mxu0 0.0
  %1485 = vmatprep.subr.mxu0 0.0
  %1486 = vmatpush1.msra.mxu0 0.0
  %1487 = vmatprep.subr.mxu0 0.0
  %1488 = vmatpush1.msra.mxu0 0.0
  %1489 = vmatprep.subr.mxu0 0.0
  %1490 = vmatpush1.msra.mxu0 0.0
  %1491 = vmatprep.mubr.f32.mxu0 0.0
  %1492 = vmatmul.mubr.f32.gmra.mrb[0].mxu0 %v1349
  %v1493 = vpop.f32.mrb[0].mxu0
  %v1494 = vadd.f32 0.0, %v1493
  %v1495 = vpop.f32.mrb[0].mxu0
  %1496 = vdwg.mxu0
  %v1497 = vadd.f32 %v1354, %v1494
  %v1498 = vtanh.pop %v1497
  %v1499 = vsel %vm402, %v1426, 0.0
  %v1500 = vsel %vm395, %v1498, 0.0
  %v1501 = vmax.f32 %v1350, %v1499
  %v1502 = vmax.f32 %v1351, %v1500
  %v1503 = vtanh.pop %v1501
  %v1504 = vtanh.pop %v1502
  %v1505 = vld [vmem:[%s6] sm:$0xff]
  %v1506 = vld [vmem:[%s6 + $0x8] sm:$0xff]
  %v1507 = vld [vmem:[%s6 + $0x10] sm:$0xff]
  %v1508 = vld [vmem:[%s6 + $0x18] sm:$0xff]
  %v1509 = vld [vmem:[%s6 + $0x20] sm:$0xff]
  %v1510 = vld [vmem:[%s6 + $0x28] sm:$0xff]
  %v1511 = vld [vmem:[%s6 + $0x30] sm:$0xff]
  %v1512 = vld [vmem:[%s6 + $0x38] sm:$0xff]
  %v1513 = vld [vmem:[%s6 + $0x40] sm:$0xff]
  %v1514 = vld [vmem:[%s6 + $0x48] sm:$0xff]
  %v1515 = vld [vmem:[%s6 + $0x50] sm:$0xff]
  %v1516 = vld [vmem:[%s6 + $0x58] sm:$0xff]
  %v1517 = vld [vmem:[%s6 + $0x60] sm:$0xff]
  %v1518 = vld [vmem:[%s6 + $0x68] sm:$0xff]
  %v1519 = vld [vmem:[%s6 + $0x70] sm:$0xff]
  %v1520 = vld [vmem:[%s6 + $0x78] sm:$0xff]
  %v1521 = vld [vmem:[%s6 + $0x80] sm:$0xff]
  %v1522 = vld [vmem:[%s6 + $0x88] sm:$0xff]
  %v1523 = vld [vmem:[%s6 + $0x90] sm:$0xff]
  %v1524 = vld [vmem:[%s6 + $0x98] sm:$0xff]
  %v1525 = vld [vmem:[%s6 + $0xa0] sm:$0xff]
  %v1526 = vld [vmem:[%s6 + $0xa8] sm:$0xff]
  %v1527 = vld [vmem:[%s6 + $0xb0] sm:$0xff]
  %v1528 = vld [vmem:[%s6 + $0xb8] sm:$0xff]
  %v1529 = vld [vmem:[%s6 + $0xc0] sm:$0xff]
  %v1530 = vld [vmem:[%s6 + $0xc8] sm:$0xff]
  %v1531 = vld [vmem:[%s6 + $0xd0] sm:$0xff]
  %v1532 = vld [vmem:[%s6 + $0xd8] sm:$0xff]
  %v1533 = vld [vmem:[%s6 + $0xe0] sm:$0xff]
  %v1534 = vld [vmem:[%s6 + $0xe8] sm:$0xff]
  %v1535 = vld [vmem:[%s6 + $0xf0] sm:$0xff]
  %v1536 = vld [vmem:[%s6 + $0xf8] sm:$0xff]
  %v1537 = vld [vmem:[%s7] sm:$0x1]
  %v1539 = vlaneseq
  %v1540 = vshrl.u32 %v1539, 7
  %v1541 = vsub.s32 0, %v1540
  %v1542 = vrot.slane %v1537, %v1541
  %1544 = vmatprep.subr.mxu0 0.0
  %1545 = vmatpush1.msra.mxu0 %v1505
  %1546 = vmatprep.subr.mxu0 0.0
  %1547 = vmatpush1.msra.mxu0 %v1506
  %1548 = vmatprep.subr.mxu0 0.0
  %1549 = vmatpush1.msra.mxu0 %v1507
  %1550 = vmatprep.subr.mxu0 0.0
  %1551 = vmatpush1.msra.mxu0 %v1508
  %1552 = vmatprep.subr.mxu0 0.0
  %1553 = vmatpush1.msra.mxu0 %v1509
  %1554 = vmatprep.subr.mxu0 0.0
  %1555 = vmatpush1.msra.mxu0 %v1510
  %1556 = vmatprep.subr.mxu0 0.0
  %1557 = vmatpush1.msra.mxu0 %v1511
  %1558 = vmatprep.subr.mxu0 0.0
  %1559 = vmatpush1.msra.mxu0 %v1512
  %1560 = vmatprep.subr.mxu0 0.0
  %1561 = vmatpush1.msra.mxu0 %v1513
  %1562 = vmatprep.subr.mxu0 0.0
  %1563 = vmatpush1.msra.mxu0 %v1514
  %1564 = vmatprep.subr.mxu0 0.0
  %1565 = vmatpush1.msra.mxu0 %v1515
  %1566 = vmatprep.subr.mxu0 0.0
  %1567 = vmatpush1.msra.mxu0 %v1516
  %1568 = vmatprep.subr.mxu0 0.0
  %1569 = vmatpush1.msra.mxu0 %v1517
  %1570 = vmatprep.subr.mxu0 0.0
  %1571 = vmatpush1.msra.mxu0 %v1518
  %1572 = vmatprep.subr.mxu0 0.0
  %1573 = vmatpush1.msra.mxu0 %v1519
  %1574 = vmatprep.subr.mxu0 0.0
  %1575 = vmatpush1.msra.mxu0 %v1520
  %1576 = vmatprep.subr.mxu0 0.0
  %1577 = vmatpush1.msra.mxu0 %v1521
  %1578 = vmatprep.subr.mxu0 0.0
  %1579 = vmatpush1.msra.mxu0 %v1522
  %1580 = vmatprep.subr.mxu0 0.0
  %1581 = vmatpush1.msra.mxu0 %v1523
  %1582 = vmatprep.subr.mxu0 0.0
  %1583 = vmatpush1.msra.mxu0 %v1524
  %1584 = vmatprep.subr.mxu0 0.0
  %1585 = vmatpush1.msra.mxu0 %v1525
  %1586 = vmatprep.subr.mxu0 0.0
  %1587 = vmatpush1.msra.mxu0 %v1526
  %1588 = vmatprep.subr.mxu0 0.0
  %1589 = vmatpush1.msra.mxu0 %v1527
  %1590 = vmatprep.subr.mxu0 0.0
  %1591 = vmatpush1.msra.mxu0 %v1528
  %1592 = vmatprep.subr.mxu0 0.0
  %1593 = vmatpush1.msra.mxu0 %v1529
  %1594 = vmatprep.subr.mxu0 0.0
  %1595 = vmatpush1.msra.mxu0 %v1530
  %1596 = vmatprep.subr.mxu0 0.0
  %1597 = vmatpush1.msra.mxu0 %v1531
  %1598 = vmatprep.subr.mxu0 0.0
  %1599 = vmatpush1.msra.mxu0 %v1532
  %1600 = vmatprep.subr.mxu0 0.0
  %1601 = vmatpush1.msra.mxu0 %v1533
  %1602 = vmatprep.subr.mxu0 0.0
  %1603 = vmatpush1.msra.mxu0 %v1534
  %1604 = vmatprep.subr.mxu0 0.0
  %1605 = vmatpush1.msra.mxu0 %v1535
  %1606 = vmatprep.subr.mxu0 0.0
  %1607 = vmatpush1.msra.mxu0 %v1536
  %1608 = vmatprep.mubr.f32.mxu0 %v1504
  %1609 = vmatmul.mubr.f32.gmra.mrb[0].mxu0 %v1503
  %v1610 = vpop.f32.mrb[0].mxu0
  %v1611 = vadd.f32 %v1542, %v1610
  %v1612 = vpop.f32.mrb[0].mxu0
  %1613 = vdwg.mxu0
  %1614 = vmax.xlane.f32.xlu0 %v1611
  %v1615 = vpop.xlane.xlu0 %1614
  %v1616 = vsub.f32 %v1611, %v1615
  %v1617 = vmul.f32 %v1616, 1.442695
  %v1618 = vpow.pop %v1617
  %1619 = vadd.xlane.f32.xlu0 %v1618
  %v1620 = vpop.xlane.xlu0 %1619
  %v1621 = vlog2.pop %v1620
  %v1622 = vmul.f32 %v1621, 0.6931472
  %v1623 = vsub.f32 %v1616, %v1622
  %1624 = vst [vmem:[%s8] sm:$0xff] %v1623
  // Predicated region
  $region34: #{textrnn_forward.1} parent=0 // pred_check
    _
  $region35: #{textrnn_forward.1} parent=0 // pred_check_branch
    %1626 = sbr.rel (0) target = $region37
  $region36: #{textrnn_forward.1} parent=0 // pred_region
    _
  $region37: #{textrnn_forward.1} parent=0 // pred_fallthru
    _
  // Predicated region
  $region38: #{textrnn_forward.1} parent=0 // pred_check
    _
  $region39: #{textrnn_forward.1} parent=0 // pred_check_branch
    %1628 = sbr.rel (0) target = $region41
  $region40: #{textrnn_forward.1} parent=0 // pred_region
    _
  $region41: #{textrnn_forward.1} parent=0 // pred_fallthru
    _

</llo_original>
